<compile_context>
chip_gen: v7x
topology: tpu7x:2x2x1
jax: 0.10.0
libtpu: 0.0.40
codegen_flags: <defaults>
</compile_context>

<pallas_src>
import numpy as np

import jax
import jax.numpy as jnp
from jax import lax
from jax.experimental import pallas as pl
from jax.experimental.pallas import tpu as pltpu


_IN_H, _IN_W = 32, 16          # TaxiNet32x16 input spatial size (single channel)
_L1_LEN = 16 * 4 * 8           # conv0 output, flattened in (y, co, x) order


# ---------------------------------------------------------------------------
# Fused kernel: entire forward pass on VMEM-resident operands.
# ---------------------------------------------------------------------------
def _taxinet_fused_kernel(x_ref, w0b_ref, b0_ref, w1_ref, b1_ref, w2_ref, b2_ref,
                          w3_ref, b3_ref, w4_ref, b4_ref, wf_ref, bf_ref,
                          out_ref, h1_ref):
    """x_ref: (N, 512) flattened input image.
    w0b_ref: (16, 48, 32) conv0 as 16 per-output-row banded GEMMs.
    b0_ref : (1, 32) conv0 bias broadcast over the 8 output columns.
    w1..w4 : unrolled conv GEMM matrices; wf/bf: fc1.
    h1_ref : (N, 512) VMEM scratch for the conv0 output, (y, co, x) order."""
    # conv0 + ReLU: output row y only touches input rows 2y-1..2y+1, i.e. a
    # contiguous 48-element window of the flattened input.
    for y in range(16):
        ws = max(2 * y - 1, 0)                              # clamped window start row
        xs = x_ref[:, ws * 16:ws * 16 + 48]                 # (N, 48)
        r = jnp.dot(xs, w0b_ref[y], preferred_element_type=jnp.float32)
        r = jnp.maximum(r + b0_ref[...], 0.0)
        h1_ref[:, y * 32:(y + 1) * 32] = r                  # store in (y, co, x) layout

    h = h1_ref[...]                                         # (N, 512)
    # conv1..conv4 (+ReLU) and fc1 as plain GEMMs on flattened activations.
    h = jnp.maximum(jnp.dot(h, w1_ref[...], preferred_element_type=jnp.float32) + b1_ref[...], 0.0)
    h = jnp.maximum(jnp.dot(h, w2_ref[...], preferred_element_type=jnp.float32) + b2_ref[...], 0.0)
    h = jnp.maximum(jnp.dot(h, w3_ref[...], preferred_element_type=jnp.float32) + b3_ref[...], 0.0)
    h = jnp.maximum(jnp.dot(h, w4_ref[...], preferred_element_type=jnp.float32) + b4_ref[...], 0.0)
    out_ref[...] = jnp.dot(h, wf_ref[...], preferred_element_type=jnp.float32) + bf_ref[...]


def taxinet32x16_forward(pparams, x):
    """Fused Pallas forward. x: (N, 1, 32, 16) NCHW float32 -> (N, 2)."""
    N = x.shape[0]
    x_flat = x.reshape(N, _IN_H * _IN_W)                    # C=1: flat index = h*16 + w
    args = (x_flat, pparams["w0b"], pparams["b0"], pparams["w1"], pparams["b1"],
            pparams["w2"], pparams["b2"], pparams["w3"], pparams["b3"],
            pparams["w4"], pparams["b4"], pparams["wf"], pparams["bf"])
    flops = 2 * N * (16 * 48 * 32 + 512 * 128 + 128 * 32 + 32 * 8 + 8 * 8 + 8 * 2)
    bytes_accessed = 4 * (sum(int(a.size) for a in args) + N * 2)
    # NOTE: at batch sizes >> 2 one would add a grid over batch tiles with
    # dimension_semantics=("parallel",) so both v7x TensorCores are used; at
    # N=2 a single VMEM-resident block is optimal (whole net < 0.5 MB).
    return pl.pallas_call(
        _taxinet_fused_kernel,
        out_shape=jax.ShapeDtypeStruct((N, 2), jnp.float32),
        in_specs=[pl.BlockSpec(memory_space=pltpu.MemorySpace.VMEM)] * len(args),
        out_specs=pl.BlockSpec(memory_space=pltpu.MemorySpace.VMEM),
        scratch_shapes=[pltpu.VMEM((N, _L1_LEN), jnp.float32)],
        cost_estimate=pl.CostEstimate(flops=flops, transcendentals=0,
                                      bytes_accessed=bytes_accessed),
    )(*args)


# ---------------------------------------------------------------------------
# One-time (init) weight transforms: bake conv stride/padding/im2col into GEMMs.
# ---------------------------------------------------------------------------
def _unrolled_conv_matrix(w, in_hw, out_hw, stride, fin, fout):
    """Conv2d(k=3, pad=1) as a dense (Ci*Hi*Wi, Co*Ho*Wo) GEMM matrix.
    fin/fout map (channel, row, col) to the flat index of the layer's
    input / output activation vector."""
    w = np.asarray(w, np.float32)
    Co, Ci, KH, KW = w.shape
    Hi, Wi = in_hw
    Ho, Wo = out_hw
    sh, sw = stride
    m = np.zeros((Ci * Hi * Wi, Co * Ho * Wo), np.float32)
    for co in range(Co):
        for oh in range(Ho):
            for ow in range(Wo):
                col = fout(co, oh, ow)
                for ci in range(Ci):
                    for kh in range(KH):
                        for kw in range(KW):
                            ih = oh * sh + kh - 1
                            iw = ow * sw + kw - 1
                            if 0 <= ih < Hi and 0 <= iw < Wi:
                                m[fin(ci, ih, iw), col] = w[co, ci, kh, kw]
    return m


def _bias_row(b, co_n, out_hw, fout):
    b = np.asarray(b, np.float32)
    Ho, Wo = out_hw
    r = np.zeros((1, co_n * Ho * Wo), np.float32)
    for co in range(co_n):
        for oh in range(Ho):
            for ow in range(Wo):
                r[0, fout(co, oh, ow)] = b[co]
    return r


def _banded_conv0(w0):
    """conv0 (Cin=1, 32x16 -> 4x16x8, stride 2, pad 1) as 16 per-output-row
    (48, 32) GEMMs: output row y reads only input rows 2y-1..2y+1 (clamped)."""
    w0 = np.asarray(w0, np.float32)
    bands = np.zeros((16, 48, 32), np.float32)
    for y in range(16):
        ws = max(2 * y - 1, 0)
        for co in range(4):
            for x in range(8):
                for kh in range(3):
                    for kw in range(3):
                        ih = 2 * y + kh - 1
                        iw = 2 * x + kw - 1
                        if 0 <= ih < 32 and 0 <= iw < 16:
                            bands[y, (ih - ws) * 16 + iw, co * 8 + x] = w0[co, 0, kh, kw]
    return bands


def prepare_pallas_params(params):
    """Pre-transform PyTorch-layout params once, outside the jitted forward."""
    def nchw(h, w):
        return lambda c, y, x: (c * h + y) * w + x

    l1 = lambda c, y, x: (y * 4 + c) * 8 + x    # conv0 output layout: (y, co, x)

    p = {
        "w0b": _banded_conv0(params["conv0"]["w"]),
        "b0": np.repeat(np.asarray(params["conv0"]["b"], np.float32), 8).reshape(1, 32),
        "w1": _unrolled_conv_matrix(params["conv1"]["w"], (16, 8), (8, 4), (2, 2), l1, nchw(8, 4)),
        "b1": _bias_row(params["conv1"]["b"], 4, (8, 4), nchw(8, 4)),
        "w2": _unrolled_conv_matrix(params["conv2"]["w"], (8, 4), (4, 2), (2, 2), nchw(8, 4), nchw(4, 2)),
        "b2": _bias_row(params["conv2"]["b"], 4, (4, 2), nchw(4, 2)),
        "w3": _unrolled_conv_matrix(params["conv3"]["w"], (4, 2), (2, 1), (2, 2), nchw(4, 2), nchw(2, 1)),
        "b3": _bias_row(params["conv3"]["b"], 4, (2, 1), nchw(2, 1)),
        "w4": _unrolled_conv_matrix(params["conv4"]["w"], (2, 1), (2, 1), (1, 1), nchw(2, 1), nchw(2, 1)),
        "b4": _bias_row(params["conv4"]["b"], 4, (2, 1), nchw(2, 1)),
        "wf": np.asarray(params["fc1"]["w"], np.float32).T.copy(),     # (8, 2)
        "bf": np.asarray(params["fc1"]["b"], np.float32).reshape(1, 2),
    }
    return {k: jnp.asarray(v) for k, v in p.items()}


def init_params(key):
    """Deterministic synthetic params with the shapes from TaxiNet32x16.__init__."""
    # TODO(synk): load_soi_weight (TF GraphDef checkpoint loading) has no Pallas
    # equivalent and is intentionally replaced by synthetic deterministic init.
    shapes = [
        ("conv0", (4, 1, 3, 3)),
        ("conv1", (4, 4, 3, 3)),
        ("conv2", (4, 4, 3, 3)),
        ("conv3", (4, 4, 3, 3)),
        ("conv4", (4, 4, 3, 3)),
        ("fc1", (2, 8)),
    ]
    params = {}
    for name, wshape in shapes:
        key, kw_, kb_ = jax.random.split(key, 3)
        fan_in = int(np.prod(wshape[1:]))
        bound = 1.0 / (fan_in ** 0.5)
        params[name] = {
            "w": jax.random.uniform(kw_, wshape, jnp.float32, -bound, bound),
            "b": jax.random.uniform(kb_, (wshape[0],), jnp.float32, -bound, bound),
        }
    return params


# ---------------------------------------------------------------------------
# Pure-JAX (XLA) reference with PyTorch semantics, for verification.
# ---------------------------------------------------------------------------
def taxinet32x16_reference(params, x):
    def conv(x, w, b, stride):
        y = lax.conv_general_dilated(
            x, w, window_strides=stride, padding=((1, 1), (1, 1)),
            dimension_numbers=("NCHW", "OIHW", "NCHW"))
        return jax.nn.relu(y + b.reshape(1, -1, 1, 1))

    x = conv(x, params["conv0"]["w"], params["conv0"]["b"], (2, 2))
    x = conv(x, params["conv1"]["w"], params["conv1"]["b"], (2, 2))
    x = conv(x, params["conv2"]["w"], params["conv2"]["b"], (2, 2))
    x = conv(x, params["conv3"]["w"], params["conv3"]["b"], (2, 2))
    x = conv(x, params["conv4"]["w"], params["conv4"]["b"], (1, 1))
    x = x.reshape(x.shape[0], -1)
    return x @ params["fc1"]["w"].T + params["fc1"]["b"]


if __name__ == "__main__":
    key = jax.random.PRNGKey(0)
    pkey, xkey = jax.random.split(key)
    params = init_params(pkey)
    pparams = prepare_pallas_params(params)   # one-time weight transform

    # TaxiNet32x16 expects a single-channel 32x16 image (NCHW): four stride-2
    # convs reduce 32x16 -> 2x1, flatten gives 4*2*1 = 8 features for fc1(8->2).
    x = jax.random.normal(xkey, (2, 1, 32, 16), jnp.float32)

    out = jax.block_until_ready(jax.jit(taxinet32x16_forward)(pparams, x))
    assert out.shape == (2, 2), out.shape

    ref = jax.block_until_ready(jax.jit(taxinet32x16_reference)(params, x))
    if not jnp.allclose(out, ref, atol=1e-4, rtol=1e-4):
        raise AssertionError("Pallas output does not match XLA reference")

    print("KERNEL_OK")
</pallas_src>

<mosaic_0001>
module attributes {stable_mosaic.version = 11 : i64} {
  func.func @_taxinet_fused_kernel(%arg0: memref<2x512xf32, #tpu.memory_space<vmem>>, %arg1: memref<16x48x32xf32, #tpu.memory_space<vmem>>, %arg2: memref<1x32xf32, #tpu.memory_space<vmem>>, %arg3: memref<512x128xf32, #tpu.memory_space<vmem>>, %arg4: memref<1x128xf32, #tpu.memory_space<vmem>>, %arg5: memref<128x32xf32, #tpu.memory_space<vmem>>, %arg6: memref<1x32xf32, #tpu.memory_space<vmem>>, %arg7: memref<32x8xf32, #tpu.memory_space<vmem>>, %arg8: memref<1x8xf32, #tpu.memory_space<vmem>>, %arg9: memref<8x8xf32, #tpu.memory_space<vmem>>, %arg10: memref<1x8xf32, #tpu.memory_space<vmem>>, %arg11: memref<8x2xf32, #tpu.memory_space<vmem>>, %arg12: memref<1x2xf32, #tpu.memory_space<vmem>>, %arg13: memref<2x2xf32, #tpu.memory_space<vmem>>, %arg14: memref<2x512xf32, #tpu.memory_space<vmem>>) attributes {dimension_semantics = [], scalar_prefetch = 0 : i64, scratch_operands = 1 : i64, tpu.core_type = #tpu.core_type<tc>} {
    %c0 = arith.constant 0 : index
    %c0_0 = arith.constant 0 : index
    %0 = vector.load %arg0[%c0, %c0_0] : memref<2x512xf32, #tpu.memory_space<vmem>>, vector<2x48xf32>
    %c0_1 = arith.constant 0 : index
    %c0_2 = arith.constant 0 : index
    %c0_3 = arith.constant 0 : index
    %1 = vector.load %arg1[%c0_1, %c0_2, %c0_3] : memref<16x48x32xf32, #tpu.memory_space<vmem>>, vector<1x48x32xf32>
    %2 = vector.shape_cast %1 : vector<1x48x32xf32> to vector<48x32xf32>
    %cst = arith.constant dense<0.000000e+00> : vector<2x32xf32>
    %3 = tpu.matmul %0, %2, %cst {dimension_numbers = #tpu.dot_dimension_numbers<[1], [0], [0], [1], [0, 0, 1, 1], [], []>} : vector<2x48xf32>, vector<48x32xf32>, vector<2x32xf32> -> vector<2x32xf32>
    %c0_4 = arith.constant 0 : index
    %c0_5 = arith.constant 0 : index
    %4 = vector.load %arg2[%c0_4, %c0_5] : memref<1x32xf32, #tpu.memory_space<vmem>>, vector<1x32xf32>
    %5 = vector.broadcast %4 : vector<1x32xf32> to vector<2x32xf32>
    %6 = arith.addf %3, %5 : vector<2x32xf32>
    %cst_6 = arith.constant 0.000000e+00 : f32
    %7 = vector.broadcast %cst_6 : f32 to vector<2x32xf32>
    %8 = arith.maximumf %6, %7 : vector<2x32xf32>
    %c0_7 = arith.constant 0 : index
    %c0_8 = arith.constant 0 : index
    %9 = vector.load %arg14[%c0_7, %c0_8] : memref<2x512xf32, #tpu.memory_space<vmem>>, vector<2x32xf32>
    tpu.vector_store %arg14[%c0_7, %c0_8], %8 {strides = array<i32>} : memref<2x512xf32, #tpu.memory_space<vmem>>, vector<2x32xf32>,
    %c0_9 = arith.constant 0 : index
    %c16 = arith.constant 16 : index
    %10 = vector.load %arg0[%c0_9, %c16] : memref<2x512xf32, #tpu.memory_space<vmem>>, vector<2x48xf32>
    %c1 = arith.constant 1 : index
    %c0_10 = arith.constant 0 : index
    %c0_11 = arith.constant 0 : index
    %11 = vector.load %arg1[%c1, %c0_10, %c0_11] : memref<16x48x32xf32, #tpu.memory_space<vmem>>, vector<1x48x32xf32>
    %12 = vector.shape_cast %11 : vector<1x48x32xf32> to vector<48x32xf32>
    %cst_12 = arith.constant dense<0.000000e+00> : vector<2x32xf32>
    %13 = tpu.matmul %10, %12, %cst_12 {dimension_numbers = #tpu.dot_dimension_numbers<[1], [0], [0], [1], [0, 0, 1, 1], [], []>} : vector<2x48xf32>, vector<48x32xf32>, vector<2x32xf32> -> vector<2x32xf32>
    %c0_13 = arith.constant 0 : index
    %c0_14 = arith.constant 0 : index
    %14 = vector.load %arg2[%c0_13, %c0_14] : memref<1x32xf32, #tpu.memory_space<vmem>>, vector<1x32xf32>
    %15 = vector.broadcast %14 : vector<1x32xf32> to vector<2x32xf32>
    %16 = arith.addf %13, %15 : vector<2x32xf32>
    %cst_15 = arith.constant 0.000000e+00 : f32
    %17 = vector.broadcast %cst_15 : f32 to vector<2x32xf32>
    %18 = arith.maximumf %16, %17 : vector<2x32xf32>
    %c0_16 = arith.constant 0 : index
    %c32 = arith.constant 32 : index
    %19 = vector.load %arg14[%c0_16, %c32] : memref<2x512xf32, #tpu.memory_space<vmem>>, vector<2x32xf32>
    tpu.vector_store %arg14[%c0_16, %c32], %18 {strides = array<i32>} : memref<2x512xf32, #tpu.memory_space<vmem>>, vector<2x32xf32>,
    %c0_17 = arith.constant 0 : index
    %c48 = arith.constant 48 : index
    %20 = vector.load %arg0[%c0_17, %c48] : memref<2x512xf32, #tpu.memory_space<vmem>>, vector<2x48xf32>
    %c2 = arith.constant 2 : index
    %c0_18 = arith.constant 0 : index
    %c0_19 = arith.constant 0 : index
    %21 = vector.load %arg1[%c2, %c0_18, %c0_19] : memref<16x48x32xf32, #tpu.memory_space<vmem>>, vector<1x48x32xf32>
    %22 = vector.shape_cast %21 : vector<1x48x32xf32> to vector<48x32xf32>
    %cst_20 = arith.constant dense<0.000000e+00> : vector<2x32xf32>
    %23 = tpu.matmul %20, %22, %cst_20 {dimension_numbers = #tpu.dot_dimension_numbers<[1], [0], [0], [1], [0, 0, 1, 1], [], []>} : vector<2x48xf32>, vector<48x32xf32>, vector<2x32xf32> -> vector<2x32xf32>
    %c0_21 = arith.constant 0 : index
    %c0_22 = arith.constant 0 : index
    %24 = vector.load %arg2[%c0_21, %c0_22] : memref<1x32xf32, #tpu.memory_space<vmem>>, vector<1x32xf32>
    %25 = vector.broadcast %24 : vector<1x32xf32> to vector<2x32xf32>
    %26 = arith.addf %23, %25 : vector<2x32xf32>
    %cst_23 = arith.constant 0.000000e+00 : f32
    %27 = vector.broadcast %cst_23 : f32 to vector<2x32xf32>
    %28 = arith.maximumf %26, %27 : vector<2x32xf32>
    %c0_24 = arith.constant 0 : index
    %c64 = arith.constant 64 : index
    %29 = vector.load %arg14[%c0_24, %c64] : memref<2x512xf32, #tpu.memory_space<vmem>>, vector<2x32xf32>
    tpu.vector_store %arg14[%c0_24, %c64], %28 {strides = array<i32>} : memref<2x512xf32, #tpu.memory_space<vmem>>, vector<2x32xf32>,
    %c0_25 = arith.constant 0 : index
    %c80 = arith.constant 80 : index
    %30 = vector.load %arg0[%c0_25, %c80] : memref<2x512xf32, #tpu.memory_space<vmem>>, vector<2x48xf32>
    %c3 = arith.constant 3 : index
    %c0_26 = arith.constant 0 : index
    %c0_27 = arith.constant 0 : index
    %31 = vector.load %arg1[%c3, %c0_26, %c0_27] : memref<16x48x32xf32, #tpu.memory_space<vmem>>, vector<1x48x32xf32>
    %32 = vector.shape_cast %31 : vector<1x48x32xf32> to vector<48x32xf32>
    %cst_28 = arith.constant dense<0.000000e+00> : vector<2x32xf32>
    %33 = tpu.matmul %30, %32, %cst_28 {dimension_numbers = #tpu.dot_dimension_numbers<[1], [0], [0], [1], [0, 0, 1, 1], [], []>} : vector<2x48xf32>, vector<48x32xf32>, vector<2x32xf32> -> vector<2x32xf32>
    %c0_29 = arith.constant 0 : index
    %c0_30 = arith.constant 0 : index
    %34 = vector.load %arg2[%c0_29, %c0_30] : memref<1x32xf32, #tpu.memory_space<vmem>>, vector<1x32xf32>
    %35 = vector.broadcast %34 : vector<1x32xf32> to vector<2x32xf32>
    %36 = arith.addf %33, %35 : vector<2x32xf32>
    %cst_31 = arith.constant 0.000000e+00 : f32
    %37 = vector.broadcast %cst_31 : f32 to vector<2x32xf32>
    %38 = arith.maximumf %36, %37 : vector<2x32xf32>
    %c0_32 = arith.constant 0 : index
    %c96 = arith.constant 96 : index
    %39 = vector.load %arg14[%c0_32, %c96] : memref<2x512xf32, #tpu.memory_space<vmem>>, vector<2x32xf32>
    tpu.vector_store %arg14[%c0_32, %c96], %38 {strides = array<i32>} : memref<2x512xf32, #tpu.memory_space<vmem>>, vector<2x32xf32>,
    %c0_33 = arith.constant 0 : index
    %c112 = arith.constant 112 : index
    %40 = vector.load %arg0[%c0_33, %c112] : memref<2x512xf32, #tpu.memory_space<vmem>>, vector<2x48xf32>
    %c4 = arith.constant 4 : index
    %c0_34 = arith.constant 0 : index
    %c0_35 = arith.constant 0 : index
    %41 = vector.load %arg1[%c4, %c0_34, %c0_35] : memref<16x48x32xf32, #tpu.memory_space<vmem>>, vector<1x48x32xf32>
    %42 = vector.shape_cast %41 : vector<1x48x32xf32> to vector<48x32xf32>
    %cst_36 = arith.constant dense<0.000000e+00> : vector<2x32xf32>
    %43 = tpu.matmul %40, %42, %cst_36 {dimension_numbers = #tpu.dot_dimension_numbers<[1], [0], [0], [1], [0, 0, 1, 1], [], []>} : vector<2x48xf32>, vector<48x32xf32>, vector<2x32xf32> -> vector<2x32xf32>
    %c0_37 = arith.constant 0 : index
    %c0_38 = arith.constant 0 : index
    %44 = vector.load %arg2[%c0_37, %c0_38] : memref<1x32xf32, #tpu.memory_space<vmem>>, vector<1x32xf32>
    %45 = vector.broadcast %44 : vector<1x32xf32> to vector<2x32xf32>
    %46 = arith.addf %43, %45 : vector<2x32xf32>
    %cst_39 = arith.constant 0.000000e+00 : f32
    %47 = vector.broadcast %cst_39 : f32 to vector<2x32xf32>
    %48 = arith.maximumf %46, %47 : vector<2x32xf32>
    %c0_40 = arith.constant 0 : index
    %c128 = arith.constant 128 : index
    %49 = vector.load %arg14[%c0_40, %c128] : memref<2x512xf32, #tpu.memory_space<vmem>>, vector<2x32xf32>
    tpu.vector_store %arg14[%c0_40, %c128], %48 {strides = array<i32>} : memref<2x512xf32, #tpu.memory_space<vmem>>, vector<2x32xf32>,
    %c0_41 = arith.constant 0 : index
    %c144 = arith.constant 144 : index
    %50 = vector.load %arg0[%c0_41, %c144] : memref<2x512xf32, #tpu.memory_space<vmem>>, vector<2x48xf32>
    %c5 = arith.constant 5 : index
    %c0_42 = arith.constant 0 : index
    %c0_43 = arith.constant 0 : index
    %51 = vector.load %arg1[%c5, %c0_42, %c0_43] : memref<16x48x32xf32, #tpu.memory_space<vmem>>, vector<1x48x32xf32>
    %52 = vector.shape_cast %51 : vector<1x48x32xf32> to vector<48x32xf32>
    %cst_44 = arith.constant dense<0.000000e+00> : vector<2x32xf32>
    %53 = tpu.matmul %50, %52, %cst_44 {dimension_numbers = #tpu.dot_dimension_numbers<[1], [0], [0], [1], [0, 0, 1, 1], [], []>} : vector<2x48xf32>, vector<48x32xf32>, vector<2x32xf32> -> vector<2x32xf32>
    %c0_45 = arith.constant 0 : index
    %c0_46 = arith.constant 0 : index
    %54 = vector.load %arg2[%c0_45, %c0_46] : memref<1x32xf32, #tpu.memory_space<vmem>>, vector<1x32xf32>
    %55 = vector.broadcast %54 : vector<1x32xf32> to vector<2x32xf32>
    %56 = arith.addf %53, %55 : vector<2x32xf32>
    %cst_47 = arith.constant 0.000000e+00 : f32
    %57 = vector.broadcast %cst_47 : f32 to vector<2x32xf32>
    %58 = arith.maximumf %56, %57 : vector<2x32xf32>
    %c0_48 = arith.constant 0 : index
    %c160 = arith.constant 160 : index
    %59 = vector.load %arg14[%c0_48, %c160] : memref<2x512xf32, #tpu.memory_space<vmem>>, vector<2x32xf32>
    tpu.vector_store %arg14[%c0_48, %c160], %58 {strides = array<i32>} : memref<2x512xf32, #tpu.memory_space<vmem>>, vector<2x32xf32>,
    %c0_49 = arith.constant 0 : index
    %c176 = arith.constant 176 : index
    %60 = vector.load %arg0[%c0_49, %c176] : memref<2x512xf32, #tpu.memory_space<vmem>>, vector<2x48xf32>
    %c6 = arith.constant 6 : index
    %c0_50 = arith.constant 0 : index
    %c0_51 = arith.constant 0 : index
    %61 = vector.load %arg1[%c6, %c0_50, %c0_51] : memref<16x48x32xf32, #tpu.memory_space<vmem>>, vector<1x48x32xf32>
    %62 = vector.shape_cast %61 : vector<1x48x32xf32> to vector<48x32xf32>
    %cst_52 = arith.constant dense<0.000000e+00> : vector<2x32xf32>
    %63 = tpu.matmul %60, %62, %cst_52 {dimension_numbers = #tpu.dot_dimension_numbers<[1], [0], [0], [1], [0, 0, 1, 1], [], []>} : vector<2x48xf32>, vector<48x32xf32>, vector<2x32xf32> -> vector<2x32xf32>
    %c0_53 = arith.constant 0 : index
    %c0_54 = arith.constant 0 : index
    %64 = vector.load %arg2[%c0_53, %c0_54] : memref<1x32xf32, #tpu.memory_space<vmem>>, vector<1x32xf32>
    %65 = vector.broadcast %64 : vector<1x32xf32> to vector<2x32xf32>
    %66 = arith.addf %63, %65 : vector<2x32xf32>
    %cst_55 = arith.constant 0.000000e+00 : f32
    %67 = vector.broadcast %cst_55 : f32 to vector<2x32xf32>
    %68 = arith.maximumf %66, %67 : vector<2x32xf32>
    %c0_56 = arith.constant 0 : index
    %c192 = arith.constant 192 : index
    %69 = vector.load %arg14[%c0_56, %c192] : memref<2x512xf32, #tpu.memory_space<vmem>>, vector<2x32xf32>
    tpu.vector_store %arg14[%c0_56, %c192], %68 {strides = array<i32>} : memref<2x512xf32, #tpu.memory_space<vmem>>, vector<2x32xf32>,
    %c0_57 = arith.constant 0 : index
    %c208 = arith.constant 208 : index
    %70 = vector.load %arg0[%c0_57, %c208] : memref<2x512xf32, #tpu.memory_space<vmem>>, vector<2x48xf32>
    %c7 = arith.constant 7 : index
    %c0_58 = arith.constant 0 : index
    %c0_59 = arith.constant 0 : index
    %71 = vector.load %arg1[%c7, %c0_58, %c0_59] : memref<16x48x32xf32, #tpu.memory_space<vmem>>, vector<1x48x32xf32>
    %72 = vector.shape_cast %71 : vector<1x48x32xf32> to vector<48x32xf32>
    %cst_60 = arith.constant dense<0.000000e+00> : vector<2x32xf32>
    %73 = tpu.matmul %70, %72, %cst_60 {dimension_numbers = #tpu.dot_dimension_numbers<[1], [0], [0], [1], [0, 0, 1, 1], [], []>} : vector<2x48xf32>, vector<48x32xf32>, vector<2x32xf32> -> vector<2x32xf32>
    %c0_61 = arith.constant 0 : index
    %c0_62 = arith.constant 0 : index
    %74 = vector.load %arg2[%c0_61, %c0_62] : memref<1x32xf32, #tpu.memory_space<vmem>>, vector<1x32xf32>
    %75 = vector.broadcast %74 : vector<1x32xf32> to vector<2x32xf32>
    %76 = arith.addf %73, %75 : vector<2x32xf32>
    %cst_63 = arith.constant 0.000000e+00 : f32
    %77 = vector.broadcast %cst_63 : f32 to vector<2x32xf32>
    %78 = arith.maximumf %76, %77 : vector<2x32xf32>
    %c0_64 = arith.constant 0 : index
    %c224 = arith.constant 224 : index
    %79 = vector.load %arg14[%c0_64, %c224] : memref<2x512xf32, #tpu.memory_space<vmem>>, vector<2x32xf32>
    tpu.vector_store %arg14[%c0_64, %c224], %78 {strides = array<i32>} : memref<2x512xf32, #tpu.memory_space<vmem>>, vector<2x32xf32>,
    %c0_65 = arith.constant 0 : index
    %c240 = arith.constant 240 : index
    %80 = vector.load %arg0[%c0_65, %c240] : memref<2x512xf32, #tpu.memory_space<vmem>>, vector<2x48xf32>
    %c8 = arith.constant 8 : index
    %c0_66 = arith.constant 0 : index
    %c0_67 = arith.constant 0 : index
    %81 = vector.load %arg1[%c8, %c0_66, %c0_67] : memref<16x48x32xf32, #tpu.memory_space<vmem>>, vector<1x48x32xf32>
    %82 = vector.shape_cast %81 : vector<1x48x32xf32> to vector<48x32xf32>
    %cst_68 = arith.constant dense<0.000000e+00> : vector<2x32xf32>
    %83 = tpu.matmul %80, %82, %cst_68 {dimension_numbers = #tpu.dot_dimension_numbers<[1], [0], [0], [1], [0, 0, 1, 1], [], []>} : vector<2x48xf32>, vector<48x32xf32>, vector<2x32xf32> -> vector<2x32xf32>
    %c0_69 = arith.constant 0 : index
    %c0_70 = arith.constant 0 : index
    %84 = vector.load %arg2[%c0_69, %c0_70] : memref<1x32xf32, #tpu.memory_space<vmem>>, vector<1x32xf32>
    %85 = vector.broadcast %84 : vector<1x32xf32> to vector<2x32xf32>
    %86 = arith.addf %83, %85 : vector<2x32xf32>
    %cst_71 = arith.constant 0.000000e+00 : f32
    %87 = vector.broadcast %cst_71 : f32 to vector<2x32xf32>
    %88 = arith.maximumf %86, %87 : vector<2x32xf32>
    %c0_72 = arith.constant 0 : index
    %c256 = arith.constant 256 : index
    %89 = vector.load %arg14[%c0_72, %c256] : memref<2x512xf32, #tpu.memory_space<vmem>>, vector<2x32xf32>
    tpu.vector_store %arg14[%c0_72, %c256], %88 {strides = array<i32>} : memref<2x512xf32, #tpu.memory_space<vmem>>, vector<2x32xf32>,
    %c0_73 = arith.constant 0 : index
    %c272 = arith.constant 272 : index
    %90 = vector.load %arg0[%c0_73, %c272] : memref<2x512xf32, #tpu.memory_space<vmem>>, vector<2x48xf32>
    %c9 = arith.constant 9 : index
    %c0_74 = arith.constant 0 : index
    %c0_75 = arith.constant 0 : index
    %91 = vector.load %arg1[%c9, %c0_74, %c0_75] : memref<16x48x32xf32, #tpu.memory_space<vmem>>, vector<1x48x32xf32>
    %92 = vector.shape_cast %91 : vector<1x48x32xf32> to vector<48x32xf32>
    %cst_76 = arith.constant dense<0.000000e+00> : vector<2x32xf32>
    %93 = tpu.matmul %90, %92, %cst_76 {dimension_numbers = #tpu.dot_dimension_numbers<[1], [0], [0], [1], [0, 0, 1, 1], [], []>} : vector<2x48xf32>, vector<48x32xf32>, vector<2x32xf32> -> vector<2x32xf32>
    %c0_77 = arith.constant 0 : index
    %c0_78 = arith.constant 0 : index
    %94 = vector.load %arg2[%c0_77, %c0_78] : memref<1x32xf32, #tpu.memory_space<vmem>>, vector<1x32xf32>
    %95 = vector.broadcast %94 : vector<1x32xf32> to vector<2x32xf32>
    %96 = arith.addf %93, %95 : vector<2x32xf32>
    %cst_79 = arith.constant 0.000000e+00 : f32
    %97 = vector.broadcast %cst_79 : f32 to vector<2x32xf32>
    %98 = arith.maximumf %96, %97 : vector<2x32xf32>
    %c0_80 = arith.constant 0 : index
    %c288 = arith.constant 288 : index
    %99 = vector.load %arg14[%c0_80, %c288] : memref<2x512xf32, #tpu.memory_space<vmem>>, vector<2x32xf32>
    tpu.vector_store %arg14[%c0_80, %c288], %98 {strides = array<i32>} : memref<2x512xf32, #tpu.memory_space<vmem>>, vector<2x32xf32>,
    %c0_81 = arith.constant 0 : index
    %c304 = arith.constant 304 : index
    %100 = vector.load %arg0[%c0_81, %c304] : memref<2x512xf32, #tpu.memory_space<vmem>>, vector<2x48xf32>
    %c10 = arith.constant 10 : index
    %c0_82 = arith.constant 0 : index
    %c0_83 = arith.constant 0 : index
    %101 = vector.load %arg1[%c10, %c0_82, %c0_83] : memref<16x48x32xf32, #tpu.memory_space<vmem>>, vector<1x48x32xf32>
    %102 = vector.shape_cast %101 : vector<1x48x32xf32> to vector<48x32xf32>
    %cst_84 = arith.constant dense<0.000000e+00> : vector<2x32xf32>
    %103 = tpu.matmul %100, %102, %cst_84 {dimension_numbers = #tpu.dot_dimension_numbers<[1], [0], [0], [1], [0, 0, 1, 1], [], []>} : vector<2x48xf32>, vector<48x32xf32>, vector<2x32xf32> -> vector<2x32xf32>
    %c0_85 = arith.constant 0 : index
    %c0_86 = arith.constant 0 : index
    %104 = vector.load %arg2[%c0_85, %c0_86] : memref<1x32xf32, #tpu.memory_space<vmem>>, vector<1x32xf32>
    %105 = vector.broadcast %104 : vector<1x32xf32> to vector<2x32xf32>
    %106 = arith.addf %103, %105 : vector<2x32xf32>
    %cst_87 = arith.constant 0.000000e+00 : f32
    %107 = vector.broadcast %cst_87 : f32 to vector<2x32xf32>
    %108 = arith.maximumf %106, %107 : vector<2x32xf32>
    %c0_88 = arith.constant 0 : index
    %c320 = arith.constant 320 : index
    %109 = vector.load %arg14[%c0_88, %c320] : memref<2x512xf32, #tpu.memory_space<vmem>>, vector<2x32xf32>
    tpu.vector_store %arg14[%c0_88, %c320], %108 {strides = array<i32>} : memref<2x512xf32, #tpu.memory_space<vmem>>, vector<2x32xf32>,
    %c0_89 = arith.constant 0 : index
    %c336 = arith.constant 336 : index
    %110 = vector.load %arg0[%c0_89, %c336] : memref<2x512xf32, #tpu.memory_space<vmem>>, vector<2x48xf32>
    %c11 = arith.constant 11 : index
    %c0_90 = arith.constant 0 : index
    %c0_91 = arith.constant 0 : index
    %111 = vector.load %arg1[%c11, %c0_90, %c0_91] : memref<16x48x32xf32, #tpu.memory_space<vmem>>, vector<1x48x32xf32>
    %112 = vector.shape_cast %111 : vector<1x48x32xf32> to vector<48x32xf32>
    %cst_92 = arith.constant dense<0.000000e+00> : vector<2x32xf32>
    %113 = tpu.matmul %110, %112, %cst_92 {dimension_numbers = #tpu.dot_dimension_numbers<[1], [0], [0], [1], [0, 0, 1, 1], [], []>} : vector<2x48xf32>, vector<48x32xf32>, vector<2x32xf32> -> vector<2x32xf32>
    %c0_93 = arith.constant 0 : index
    %c0_94 = arith.constant 0 : index
    %114 = vector.load %arg2[%c0_93, %c0_94] : memref<1x32xf32, #tpu.memory_space<vmem>>, vector<1x32xf32>
    %115 = vector.broadcast %114 : vector<1x32xf32> to vector<2x32xf32>
    %116 = arith.addf %113, %115 : vector<2x32xf32>
    %cst_95 = arith.constant 0.000000e+00 : f32
    %117 = vector.broadcast %cst_95 : f32 to vector<2x32xf32>
    %118 = arith.maximumf %116, %117 : vector<2x32xf32>
    %c0_96 = arith.constant 0 : index
    %c352 = arith.constant 352 : index
    %119 = vector.load %arg14[%c0_96, %c352] : memref<2x512xf32, #tpu.memory_space<vmem>>, vector<2x32xf32>
    tpu.vector_store %arg14[%c0_96, %c352], %118 {strides = array<i32>} : memref<2x512xf32, #tpu.memory_space<vmem>>, vector<2x32xf32>,
    %c0_97 = arith.constant 0 : index
    %c368 = arith.constant 368 : index
    %120 = vector.load %arg0[%c0_97, %c368] : memref<2x512xf32, #tpu.memory_space<vmem>>, vector<2x48xf32>
    %c12 = arith.constant 12 : index
    %c0_98 = arith.constant 0 : index
    %c0_99 = arith.constant 0 : index
    %121 = vector.load %arg1[%c12, %c0_98, %c0_99] : memref<16x48x32xf32, #tpu.memory_space<vmem>>, vector<1x48x32xf32>
    %122 = vector.shape_cast %121 : vector<1x48x32xf32> to vector<48x32xf32>
    %cst_100 = arith.constant dense<0.000000e+00> : vector<2x32xf32>
    %123 = tpu.matmul %120, %122, %cst_100 {dimension_numbers = #tpu.dot_dimension_numbers<[1], [0], [0], [1], [0, 0, 1, 1], [], []>} : vector<2x48xf32>, vector<48x32xf32>, vector<2x32xf32> -> vector<2x32xf32>
    %c0_101 = arith.constant 0 : index
    %c0_102 = arith.constant 0 : index
    %124 = vector.load %arg2[%c0_101, %c0_102] : memref<1x32xf32, #tpu.memory_space<vmem>>, vector<1x32xf32>
    %125 = vector.broadcast %124 : vector<1x32xf32> to vector<2x32xf32>
    %126 = arith.addf %123, %125 : vector<2x32xf32>
    %cst_103 = arith.constant 0.000000e+00 : f32
    %127 = vector.broadcast %cst_103 : f32 to vector<2x32xf32>
    %128 = arith.maximumf %126, %127 : vector<2x32xf32>
    %c0_104 = arith.constant 0 : index
    %c384 = arith.constant 384 : index
    %129 = vector.load %arg14[%c0_104, %c384] : memref<2x512xf32, #tpu.memory_space<vmem>>, vector<2x32xf32>
    tpu.vector_store %arg14[%c0_104, %c384], %128 {strides = array<i32>} : memref<2x512xf32, #tpu.memory_space<vmem>>, vector<2x32xf32>,
    %c0_105 = arith.constant 0 : index
    %c400 = arith.constant 400 : index
    %130 = vector.load %arg0[%c0_105, %c400] : memref<2x512xf32, #tpu.memory_space<vmem>>, vector<2x48xf32>
    %c13 = arith.constant 13 : index
    %c0_106 = arith.constant 0 : index
    %c0_107 = arith.constant 0 : index
    %131 = vector.load %arg1[%c13, %c0_106, %c0_107] : memref<16x48x32xf32, #tpu.memory_space<vmem>>, vector<1x48x32xf32>
    %132 = vector.shape_cast %131 : vector<1x48x32xf32> to vector<48x32xf32>
    %cst_108 = arith.constant dense<0.000000e+00> : vector<2x32xf32>
    %133 = tpu.matmul %130, %132, %cst_108 {dimension_numbers = #tpu.dot_dimension_numbers<[1], [0], [0], [1], [0, 0, 1, 1], [], []>} : vector<2x48xf32>, vector<48x32xf32>, vector<2x32xf32> -> vector<2x32xf32>
    %c0_109 = arith.constant 0 : index
    %c0_110 = arith.constant 0 : index
    %134 = vector.load %arg2[%c0_109, %c0_110] : memref<1x32xf32, #tpu.memory_space<vmem>>, vector<1x32xf32>
    %135 = vector.broadcast %134 : vector<1x32xf32> to vector<2x32xf32>
    %136 = arith.addf %133, %135 : vector<2x32xf32>
    %cst_111 = arith.constant 0.000000e+00 : f32
    %137 = vector.broadcast %cst_111 : f32 to vector<2x32xf32>
    %138 = arith.maximumf %136, %137 : vector<2x32xf32>
    %c0_112 = arith.constant 0 : index
    %c416 = arith.constant 416 : index
    %139 = vector.load %arg14[%c0_112, %c416] : memref<2x512xf32, #tpu.memory_space<vmem>>, vector<2x32xf32>
    tpu.vector_store %arg14[%c0_112, %c416], %138 {strides = array<i32>} : memref<2x512xf32, #tpu.memory_space<vmem>>, vector<2x32xf32>,
    %c0_113 = arith.constant 0 : index
    %c432 = arith.constant 432 : index
    %140 = vector.load %arg0[%c0_113, %c432] : memref<2x512xf32, #tpu.memory_space<vmem>>, vector<2x48xf32>
    %c14 = arith.constant 14 : index
    %c0_114 = arith.constant 0 : index
    %c0_115 = arith.constant 0 : index
    %141 = vector.load %arg1[%c14, %c0_114, %c0_115] : memref<16x48x32xf32, #tpu.memory_space<vmem>>, vector<1x48x32xf32>
    %142 = vector.shape_cast %141 : vector<1x48x32xf32> to vector<48x32xf32>
    %cst_116 = arith.constant dense<0.000000e+00> : vector<2x32xf32>
    %143 = tpu.matmul %140, %142, %cst_116 {dimension_numbers = #tpu.dot_dimension_numbers<[1], [0], [0], [1], [0, 0, 1, 1], [], []>} : vector<2x48xf32>, vector<48x32xf32>, vector<2x32xf32> -> vector<2x32xf32>
    %c0_117 = arith.constant 0 : index
    %c0_118 = arith.constant 0 : index
    %144 = vector.load %arg2[%c0_117, %c0_118] : memref<1x32xf32, #tpu.memory_space<vmem>>, vector<1x32xf32>
    %145 = vector.broadcast %144 : vector<1x32xf32> to vector<2x32xf32>
    %146 = arith.addf %143, %145 : vector<2x32xf32>
    %cst_119 = arith.constant 0.000000e+00 : f32
    %147 = vector.broadcast %cst_119 : f32 to vector<2x32xf32>
    %148 = arith.maximumf %146, %147 : vector<2x32xf32>
    %c0_120 = arith.constant 0 : index
    %c448 = arith.constant 448 : index
    %149 = vector.load %arg14[%c0_120, %c448] : memref<2x512xf32, #tpu.memory_space<vmem>>, vector<2x32xf32>
    tpu.vector_store %arg14[%c0_120, %c448], %148 {strides = array<i32>} : memref<2x512xf32, #tpu.memory_space<vmem>>, vector<2x32xf32>,
    %c0_121 = arith.constant 0 : index
    %c464 = arith.constant 464 : index
    %150 = vector.load %arg0[%c0_121, %c464] : memref<2x512xf32, #tpu.memory_space<vmem>>, vector<2x48xf32>
    %c15 = arith.constant 15 : index
    %c0_122 = arith.constant 0 : index
    %c0_123 = arith.constant 0 : index
    %151 = vector.load %arg1[%c15, %c0_122, %c0_123] : memref<16x48x32xf32, #tpu.memory_space<vmem>>, vector<1x48x32xf32>
    %152 = vector.shape_cast %151 : vector<1x48x32xf32> to vector<48x32xf32>
    %cst_124 = arith.constant dense<0.000000e+00> : vector<2x32xf32>
    %153 = tpu.matmul %150, %152, %cst_124 {dimension_numbers = #tpu.dot_dimension_numbers<[1], [0], [0], [1], [0, 0, 1, 1], [], []>} : vector<2x48xf32>, vector<48x32xf32>, vector<2x32xf32> -> vector<2x32xf32>
    %c0_125 = arith.constant 0 : index
    %c0_126 = arith.constant 0 : index
    %154 = vector.load %arg2[%c0_125, %c0_126] : memref<1x32xf32, #tpu.memory_space<vmem>>, vector<1x32xf32>
    %155 = vector.broadcast %154 : vector<1x32xf32> to vector<2x32xf32>
    %156 = arith.addf %153, %155 : vector<2x32xf32>
    %cst_127 = arith.constant 0.000000e+00 : f32
    %157 = vector.broadcast %cst_127 : f32 to vector<2x32xf32>
    %158 = arith.maximumf %156, %157 : vector<2x32xf32>
    %c0_128 = arith.constant 0 : index
    %c480 = arith.constant 480 : index
    %159 = vector.load %arg14[%c0_128, %c480] : memref<2x512xf32, #tpu.memory_space<vmem>>, vector<2x32xf32>
    tpu.vector_store %arg14[%c0_128, %c480], %158 {strides = array<i32>} : memref<2x512xf32, #tpu.memory_space<vmem>>, vector<2x32xf32>,
    %c0_129 = arith.constant 0 : index
    %c0_130 = arith.constant 0 : index
    %160 = vector.load %arg14[%c0_129, %c0_130] : memref<2x512xf32, #tpu.memory_space<vmem>>, vector<2x512xf32>
    %c0_131 = arith.constant 0 : index
    %c0_132 = arith.constant 0 : index
    %161 = vector.load %arg3[%c0_131, %c0_132] : memref<512x128xf32, #tpu.memory_space<vmem>>, vector<512x128xf32>
    %cst_133 = arith.constant dense<0.000000e+00> : vector<2x128xf32>
    %162 = tpu.matmul %160, %161, %cst_133 {dimension_numbers = #tpu.dot_dimension_numbers<[1], [0], [0], [1], [0, 0, 1, 1], [], []>} : vector<2x512xf32>, vector<512x128xf32>, vector<2x128xf32> -> vector<2x128xf32>
    %c0_134 = arith.constant 0 : index
    %c0_135 = arith.constant 0 : index
    %163 = vector.load %arg4[%c0_134, %c0_135] : memref<1x128xf32, #tpu.memory_space<vmem>>, vector<1x128xf32>
    %164 = vector.broadcast %163 : vector<1x128xf32> to vector<2x128xf32>
    %165 = arith.addf %162, %164 : vector<2x128xf32>
    %cst_136 = arith.constant 0.000000e+00 : f32
    %166 = vector.broadcast %cst_136 : f32 to vector<2x128xf32>
    %167 = arith.maximumf %165, %166 : vector<2x128xf32>
    %c0_137 = arith.constant 0 : index
    %c0_138 = arith.constant 0 : index
    %168 = vector.load %arg5[%c0_137, %c0_138] : memref<128x32xf32, #tpu.memory_space<vmem>>, vector<128x32xf32>
    %cst_139 = arith.constant dense<0.000000e+00> : vector<2x32xf32>
    %169 = tpu.matmul %167, %168, %cst_139 {dimension_numbers = #tpu.dot_dimension_numbers<[1], [0], [0], [1], [0, 0, 1, 1], [], []>} : vector<2x128xf32>, vector<128x32xf32>, vector<2x32xf32> -> vector<2x32xf32>
    %c0_140 = arith.constant 0 : index
    %c0_141 = arith.constant 0 : index
    %170 = vector.load %arg6[%c0_140, %c0_141] : memref<1x32xf32, #tpu.memory_space<vmem>>, vector<1x32xf32>
    %171 = vector.broadcast %170 : vector<1x32xf32> to vector<2x32xf32>
    %172 = arith.addf %169, %171 : vector<2x32xf32>
    %cst_142 = arith.constant 0.000000e+00 : f32
    %173 = vector.broadcast %cst_142 : f32 to vector<2x32xf32>
    %174 = arith.maximumf %172, %173 : vector<2x32xf32>
    %c0_143 = arith.constant 0 : index
    %c0_144 = arith.constant 0 : index
    %175 = vector.load %arg7[%c0_143, %c0_144] : memref<32x8xf32, #tpu.memory_space<vmem>>, vector<32x8xf32>
    %cst_145 = arith.constant dense<0.000000e+00> : vector<2x8xf32>
    %176 = tpu.matmul %174, %175, %cst_145 {dimension_numbers = #tpu.dot_dimension_numbers<[1], [0], [0], [1], [0, 0, 1, 1], [], []>} : vector<2x32xf32>, vector<32x8xf32>, vector<2x8xf32> -> vector<2x8xf32>
    %c0_146 = arith.constant 0 : index
    %c0_147 = arith.constant 0 : index
    %177 = vector.load %arg8[%c0_146, %c0_147] : memref<1x8xf32, #tpu.memory_space<vmem>>, vector<1x8xf32>
    %178 = vector.broadcast %177 : vector<1x8xf32> to vector<2x8xf32>
    %179 = arith.addf %176, %178 : vector<2x8xf32>
    %cst_148 = arith.constant 0.000000e+00 : f32
    %180 = vector.broadcast %cst_148 : f32 to vector<2x8xf32>
    %181 = arith.maximumf %179, %180 : vector<2x8xf32>
    %c0_149 = arith.constant 0 : index
    %c0_150 = arith.constant 0 : index
    %182 = vector.load %arg9[%c0_149, %c0_150] : memref<8x8xf32, #tpu.memory_space<vmem>>, vector<8x8xf32>
    %cst_151 = arith.constant dense<0.000000e+00> : vector<2x8xf32>
    %183 = tpu.matmul %181, %182, %cst_151 {dimension_numbers = #tpu.dot_dimension_numbers<[1], [0], [0], [1], [0, 0, 1, 1], [], []>} : vector<2x8xf32>, vector<8x8xf32>, vector<2x8xf32> -> vector<2x8xf32>
    %c0_152 = arith.constant 0 : index
    %c0_153 = arith.constant 0 : index
    %184 = vector.load %arg10[%c0_152, %c0_153] : memref<1x8xf32, #tpu.memory_space<vmem>>, vector<1x8xf32>
    %185 = vector.broadcast %184 : vector<1x8xf32> to vector<2x8xf32>
    %186 = arith.addf %183, %185 : vector<2x8xf32>
    %cst_154 = arith.constant 0.000000e+00 : f32
    %187 = vector.broadcast %cst_154 : f32 to vector<2x8xf32>
    %188 = arith.maximumf %186, %187 : vector<2x8xf32>
    %c0_155 = arith.constant 0 : index
    %c0_156 = arith.constant 0 : index
    %189 = vector.load %arg11[%c0_155, %c0_156] : memref<8x2xf32, #tpu.memory_space<vmem>>, vector<8x2xf32>
    %cst_157 = arith.constant dense<0.000000e+00> : vector<2x2xf32>
    %190 = tpu.matmul %188, %189, %cst_157 {dimension_numbers = #tpu.dot_dimension_numbers<[1], [0], [0], [1], [0, 0, 1, 1], [], []>} : vector<2x8xf32>, vector<8x2xf32>, vector<2x2xf32> -> vector<2x2xf32>
    %c0_158 = arith.constant 0 : index
    %c0_159 = arith.constant 0 : index
    %191 = vector.load %arg12[%c0_158, %c0_159] : memref<1x2xf32, #tpu.memory_space<vmem>>, vector<1x2xf32>
    %192 = vector.broadcast %191 : vector<1x2xf32> to vector<2x2xf32>
    %193 = arith.addf %190, %192 : vector<2x2xf32>
    %c0_160 = arith.constant 0 : index
    %c0_161 = arith.constant 0 : index
    %194 = vector.load %arg13[%c0_160, %c0_161] : memref<2x2xf32, #tpu.memory_space<vmem>>, vector<2x2xf32>
    tpu.vector_store %arg13[%c0_160, %c0_161], %193 {strides = array<i32>} : memref<2x2xf32, #tpu.memory_space<vmem>>, vector<2x2xf32>,
    return
  }
}

</mosaic_0001>

<llo_original>
// kernel: taxinet32x16_forward.1
$region0: #{taxinet32x16_forward.1}
  #allocation0 [shape = 'u32[]', space=smem, size = 0x4, offset = 0x4, fixed_abs, tag = 'smem constant byte address 0x4 - core index']
  #allocation1 [shape = 'u32[144,128]{1,0:T(1,128)}', space=vmem, size = 0x12000, scoped, tag = 'internal scratch']
  #allocation2 [shape = 'f32[2,512]{1,0:T(2,128)}', space=vmem, size = 0x1000, scoped, tag = 'scratch operand']
  %s0 = inlined_call_operand.vmem [shape: f32[2,512], index: 0, kind: input, shape index: {}]
  %s1 = inlined_call_operand.vmem [shape: f32[16,48,32], index: 1, kind: input, shape index: {}]
  %s2 = inlined_call_operand.vmem [shape: f32[1,32], index: 2, kind: input, shape index: {}]
  %s3 = inlined_call_operand.vmem [shape: f32[512,128], index: 3, kind: input, shape index: {}]
  %s4 = inlined_call_operand.vmem [shape: f32[1,128], index: 4, kind: input, shape index: {}]
  %s5 = inlined_call_operand.vmem [shape: f32[128,32], index: 5, kind: input, shape index: {}]
  %s6 = inlined_call_operand.vmem [shape: f32[1,32], index: 6, kind: input, shape index: {}]
  %s7 = inlined_call_operand.vmem [shape: f32[32,8], index: 7, kind: input, shape index: {}]
  %s8 = inlined_call_operand.vmem [shape: f32[1,8], index: 8, kind: input, shape index: {}]
  %s9 = inlined_call_operand.vmem [shape: f32[8,8], index: 9, kind: input, shape index: {}]
  %s10 = inlined_call_operand.vmem [shape: f32[1,8], index: 10, kind: input, shape index: {}]
  %s11 = inlined_call_operand.vmem [shape: f32[8,2], index: 11, kind: input, shape index: {}]
  %s12 = inlined_call_operand.vmem [shape: f32[1,2], index: 12, kind: input, shape index: {}]
  %s13 = inlined_call_operand.hbm [shape: f32[2,2], index: 13, kind: output, shape index: {}]
  %s14 = sld [smem:[#allocation0]]
  $region62: #{taxinet32x16_forward.1} parent=0
    _
  %s16 = ssub.s32 1, %s14
  %s17 = scalar_select 0, %s16, %s14
  $region1: #{taxinet32x16_forward.1} parent=0
    #allocation3 [shape = 'u8[1024]{0}', space=vmem, size = 0x400, scoped, tag = 'output window, operand 0, single buffered']
    #allocation4 [shape = 's32[1]{0}', space=sflag, size = 0x4, scoped, tag = 'scoped memory for taxinet32x16_forward.1']
    %18 = vsyncpa [#allocation4], 0
    // Predicated region
    $region2: #{taxinet32x16_forward.1} parent=1 // pred_check
      _
    $region3: #{taxinet32x16_forward.1} parent=1 // pred_check_branch
      %20 = sbr.rel (0) target = $region5
    $region4: #{taxinet32x16_forward.1} parent=1 // pred_region
      _
    $region5: #{taxinet32x16_forward.1} parent=1 // pred_fallthru
      _
    // Predicated region
    $region6: #{taxinet32x16_forward.1} parent=1 // pred_check
      _
    $region7: #{taxinet32x16_forward.1} parent=1 // pred_check_branch
      %22 = sbr.rel (0) target = $region9
    $region8: #{taxinet32x16_forward.1} parent=1 // pred_region
      _
    $region9: #{taxinet32x16_forward.1} parent=1 // pred_fallthru
      _
    // Predicated region
    $region10: #{taxinet32x16_forward.1} parent=1 // pred_check
      _
    $region11: #{taxinet32x16_forward.1} parent=1 // pred_check_branch
      %24 = sbr.rel (0) target = $region13
    $region12: #{taxinet32x16_forward.1} parent=1 // pred_region
      _
    $region13: #{taxinet32x16_forward.1} parent=1 // pred_fallthru
      _
    // Predicated region
    $region14: #{taxinet32x16_forward.1} parent=1 // pred_check
      _
    $region15: #{taxinet32x16_forward.1} parent=1 // pred_check_branch
      %26 = sbr.rel (0) target = $region17
    $region16: #{taxinet32x16_forward.1} parent=1 // pred_region
      _
    $region17: #{taxinet32x16_forward.1} parent=1 // pred_fallthru
      _
    // Predicated region
    $region18: #{taxinet32x16_forward.1} parent=1 // pred_check
      _
    $region19: #{taxinet32x16_forward.1} parent=1 // pred_check_branch
      %28 = sbr.rel (0) target = $region21
    $region20: #{taxinet32x16_forward.1} parent=1 // pred_region
      _
    $region21: #{taxinet32x16_forward.1} parent=1 // pred_fallthru
      _
    // Predicated region
    $region22: #{taxinet32x16_forward.1} parent=1 // pred_check
      _
    $region23: #{taxinet32x16_forward.1} parent=1 // pred_check_branch
      %30 = sbr.rel (0) target = $region25
    $region24: #{taxinet32x16_forward.1} parent=1 // pred_region
      _
    $region25: #{taxinet32x16_forward.1} parent=1 // pred_fallthru
      _
    // Predicated region
    $region26: #{taxinet32x16_forward.1} parent=1 // pred_check
      _
    $region27: #{taxinet32x16_forward.1} parent=1 // pred_check_branch
      %32 = sbr.rel (0) target = $region29
    $region28: #{taxinet32x16_forward.1} parent=1 // pred_region
      _
    $region29: #{taxinet32x16_forward.1} parent=1 // pred_fallthru
      _
    // Predicated region
    $region30: #{taxinet32x16_forward.1} parent=1 // pred_check
      _
    $region31: #{taxinet32x16_forward.1} parent=1 // pred_check_branch
      %34 = sbr.rel (0) target = $region33
    $region32: #{taxinet32x16_forward.1} parent=1 // pred_region
      _
    $region33: #{taxinet32x16_forward.1} parent=1 // pred_fallthru
      _
    // Predicated region
    $region34: #{taxinet32x16_forward.1} parent=1 // pred_check
      _
    $region35: #{taxinet32x16_forward.1} parent=1 // pred_check_branch
      %36 = sbr.rel (0) target = $region37
    $region36: #{taxinet32x16_forward.1} parent=1 // pred_region
      _
    $region37: #{taxinet32x16_forward.1} parent=1 // pred_fallthru
      _
    // Predicated region
    $region38: #{taxinet32x16_forward.1} parent=1 // pred_check
      _
    $region39: #{taxinet32x16_forward.1} parent=1 // pred_check_branch
      %38 = sbr.rel (0) target = $region41
    $region40: #{taxinet32x16_forward.1} parent=1 // pred_region
      _
    $region41: #{taxinet32x16_forward.1} parent=1 // pred_fallthru
      _
    // Predicated region
    $region42: #{taxinet32x16_forward.1} parent=1 // pred_check
      _
    $region43: #{taxinet32x16_forward.1} parent=1 // pred_check_branch
      %40 = sbr.rel (0) target = $region45
    $region44: #{taxinet32x16_forward.1} parent=1 // pred_region
      _
    $region45: #{taxinet32x16_forward.1} parent=1 // pred_fallthru
      _
    // Predicated region
    $region46: #{taxinet32x16_forward.1} parent=1 // pred_check
      _
    $region47: #{taxinet32x16_forward.1} parent=1 // pred_check_branch
      %42 = sbr.rel (0) target = $region49
    $region48: #{taxinet32x16_forward.1} parent=1 // pred_region
      _
    $region49: #{taxinet32x16_forward.1} parent=1 // pred_fallthru
      _
    // Predicated region
    $region50: #{taxinet32x16_forward.1} parent=1 // pred_check
      _
    $region51: #{taxinet32x16_forward.1} parent=1 // pred_check_branch
      %44 = sbr.rel (0) target = $region53
    $region52: #{taxinet32x16_forward.1} parent=1 // pred_region
      _
    $region53: #{taxinet32x16_forward.1} parent=1 // pred_fallthru
      _
    %v45 = vld [vmem:[%s0] sm:$0x3]
    %v46 = vld [vmem:[%s1] sm:$0xff]
    %v47 = vld [vmem:[%s1 + $0x8] sm:$0xff]
    %v48 = vld [vmem:[%s1 + $0x10] sm:$0xff]
    %v49 = vld [vmem:[%s1 + $0x18] sm:$0xff]
    %v50 = vld [vmem:[%s1 + $0x20] sm:$0xff]
    %v51 = vld [vmem:[%s1 + $0x28] sm:$0xff]
    %v52 = vld [vmem:[%s2] sm:$0x1]
    %v54 = vlaneseq
    %v55 = vshrl.u32 %v54, 7
    %v56 = vsub.s32 0, %v55
    %v57 = vrot.slane %v52, %v56
    %vm59 = vcmask 392192
    %v61 = vsel %vm59, %v45, 0
    %63 = vmatprep.subr.mxu0 0.0
    %64 = vmatpush1.msra.mxu0 %v46
    %65 = vmatprep.subr.mxu0 0.0
    %66 = vmatpush1.msra.mxu0 %v47
    %67 = vmatprep.subr.mxu0 0.0
    %68 = vmatpush1.msra.mxu0 %v48
    %69 = vmatprep.subr.mxu0 0.0
    %70 = vmatpush1.msra.mxu0 %v49
    %71 = vmatprep.subr.mxu0 0.0
    %72 = vmatpush1.msra.mxu0 %v50
    %73 = vmatprep.subr.mxu0 0.0
    %74 = vmatpush1.msra.mxu0 %v51
    %75 = vmatprep.subr.mxu0 0.0
    %76 = vmatpush1.msra.mxu0 0.0
    %77 = vmatprep.subr.mxu0 0.0
    %78 = vmatpush1.msra.mxu0 0.0
    %79 = vmatprep.subr.mxu0 0.0
    %80 = vmatpush1.msra.mxu0 0.0
    %81 = vmatprep.subr.mxu0 0.0
    %82 = vmatpush1.msra.mxu0 0.0
    %83 = vmatprep.subr.mxu0 0.0
    %84 = vmatpush1.msra.mxu0 0.0
    %85 = vmatprep.subr.mxu0 0.0
    %86 = vmatpush1.msra.mxu0 0.0
    %87 = vmatprep.subr.mxu0 0.0
    %88 = vmatpush1.msra.mxu0 0.0
    %89 = vmatprep.subr.mxu0 0.0
    %90 = vmatpush1.msra.mxu0 0.0
    %91 = vmatprep.subr.mxu0 0.0
    %92 = vmatpush1.msra.mxu0 0.0
    %93 = vmatprep.subr.mxu0 0.0
    %94 = vmatpush1.msra.mxu0 0.0
    %95 = vmatprep.subr.mxu0 0.0
    %96 = vmatpush1.msra.mxu0 0.0
    %97 = vmatprep.subr.mxu0 0.0
    %98 = vmatpush1.msra.mxu0 0.0
    %99 = vmatprep.subr.mxu0 0.0
    %100 = vmatpush1.msra.mxu0 0.0
    %101 = vmatprep.subr.mxu0 0.0
    %102 = vmatpush1.msra.mxu0 0.0
    %103 = vmatprep.subr.mxu0 0.0
    %104 = vmatpush1.msra.mxu0 0.0
    %105 = vmatprep.subr.mxu0 0.0
    %106 = vmatpush1.msra.mxu0 0.0
    %107 = vmatprep.subr.mxu0 0.0
    %108 = vmatpush1.msra.mxu0 0.0
    %109 = vmatprep.subr.mxu0 0.0
    %110 = vmatpush1.msra.mxu0 0.0
    %111 = vmatprep.subr.mxu0 0.0
    %112 = vmatpush1.msra.mxu0 0.0
    %113 = vmatprep.subr.mxu0 0.0
    %114 = vmatpush1.msra.mxu0 0.0
    %115 = vmatprep.subr.mxu0 0.0
    %116 = vmatpush1.msra.mxu0 0.0
    %117 = vmatprep.subr.mxu0 0.0
    %118 = vmatpush1.msra.mxu0 0.0
    %119 = vmatprep.subr.mxu0 0.0
    %120 = vmatpush1.msra.mxu0 0.0
    %121 = vmatprep.subr.mxu0 0.0
    %122 = vmatpush1.msra.mxu0 0.0
    %123 = vmatprep.subr.mxu0 0.0
    %124 = vmatpush1.msra.mxu0 0.0
    %125 = vmatprep.subr.mxu0 0.0
    %126 = vmatpush1.msra.mxu0 0.0
    %127 = vmatprep.mubr.f32.mxu0 0.0
    %128 = vmatmul.mubr.f32.gmra.mrb[0].mxu0 %v61
    %v129 = vpop.f32.mrb[0].mxu0
    %v130 = vadd.f32 %v57, %v129
    %v131 = vpop.f32.mrb[0].mxu0
    %132 = vdwg.mxu0
    %v133 = vmax.f32 %v130, 0.0
    %vm134 = vcmask 254976
    %135 = vst.msk [vmem:[#allocation2] sm:$0x3] %vm134, %v133
    %v136 = vld [vmem:[%s0] sm:$0x3]
    %s137 = scalar_lea.vmem %s1, 48
    %v138 = vld [vmem:[%s137] sm:$0xff]
    %v139 = vld [vmem:[%s137 + $0x8] sm:$0xff]
    %v140 = vld [vmem:[%s137 + $0x10] sm:$0xff]
    %v141 = vld [vmem:[%s137 + $0x18] sm:$0xff]
    %v142 = vld [vmem:[%s137 + $0x20] sm:$0xff]
    %v143 = vld [vmem:[%s137 + $0x28] sm:$0xff]
    %v144 = vld [vmem:[%s2] sm:$0x1]
    %v146 = vlaneseq
    %v147 = vshrl.u32 %v146, 7
    %v148 = vsub.s32 0, %v147
    %v149 = vrot.slane %v144, %v148
    %v153 = vunpack.c.l.s4 1983009808
    %v154 = vunpack.c.0.s8 %v153
    %v155 = vlaneseq
    %v156 = vshrl.u32 %v155, 7
    %v157 = vsub.s32 %v154, %v156
    %v158 = vrot.slane %v136, %v157
    %159 = vrot.lane.b32.xlu0 %v158, 112
    %v160 = vpop.permute.xlu0 %159
    %v161 = vsel %vm59, %v160, 0
    %163 = vmatprep.subr.mxu0 0.0
    %164 = vmatpush1.msra.mxu0 %v138
    %165 = vmatprep.subr.mxu0 0.0
    %166 = vmatpush1.msra.mxu0 %v139
    %167 = vmatprep.subr.mxu0 0.0
    %168 = vmatpush1.msra.mxu0 %v140
    %169 = vmatprep.subr.mxu0 0.0
    %170 = vmatpush1.msra.mxu0 %v141
    %171 = vmatprep.subr.mxu0 0.0
    %172 = vmatpush1.msra.mxu0 %v142
    %173 = vmatprep.subr.mxu0 0.0
    %174 = vmatpush1.msra.mxu0 %v143
    %175 = vmatprep.subr.mxu0 0.0
    %176 = vmatpush1.msra.mxu0 0.0
    %177 = vmatprep.subr.mxu0 0.0
    %178 = vmatpush1.msra.mxu0 0.0
    %179 = vmatprep.subr.mxu0 0.0
    %180 = vmatpush1.msra.mxu0 0.0
    %181 = vmatprep.subr.mxu0 0.0
    %182 = vmatpush1.msra.mxu0 0.0
    %183 = vmatprep.subr.mxu0 0.0
    %184 = vmatpush1.msra.mxu0 0.0
    %185 = vmatprep.subr.mxu0 0.0
    %186 = vmatpush1.msra.mxu0 0.0
    %187 = vmatprep.subr.mxu0 0.0
    %188 = vmatpush1.msra.mxu0 0.0
    %189 = vmatprep.subr.mxu0 0.0
    %190 = vmatpush1.msra.mxu0 0.0
    %191 = vmatprep.subr.mxu0 0.0
    %192 = vmatpush1.msra.mxu0 0.0
    %193 = vmatprep.subr.mxu0 0.0
    %194 = vmatpush1.msra.mxu0 0.0
    %195 = vmatprep.subr.mxu0 0.0
    %196 = vmatpush1.msra.mxu0 0.0
    %197 = vmatprep.subr.mxu0 0.0
    %198 = vmatpush1.msra.mxu0 0.0
    %199 = vmatprep.subr.mxu0 0.0
    %200 = vmatpush1.msra.mxu0 0.0
    %201 = vmatprep.subr.mxu0 0.0
    %202 = vmatpush1.msra.mxu0 0.0
    %203 = vmatprep.subr.mxu0 0.0
    %204 = vmatpush1.msra.mxu0 0.0
    %205 = vmatprep.subr.mxu0 0.0
    %206 = vmatpush1.msra.mxu0 0.0
    %207 = vmatprep.subr.mxu0 0.0
    %208 = vmatpush1.msra.mxu0 0.0
    %209 = vmatprep.subr.mxu0 0.0
    %210 = vmatpush1.msra.mxu0 0.0
    %211 = vmatprep.subr.mxu0 0.0
    %212 = vmatpush1.msra.mxu0 0.0
    %213 = vmatprep.subr.mxu0 0.0
    %214 = vmatpush1.msra.mxu0 0.0
    %215 = vmatprep.subr.mxu0 0.0
    %216 = vmatpush1.msra.mxu0 0.0
    %217 = vmatprep.subr.mxu0 0.0
    %218 = vmatpush1.msra.mxu0 0.0
    %219 = vmatprep.subr.mxu0 0.0
    %220 = vmatpush1.msra.mxu0 0.0
    %221 = vmatprep.subr.mxu0 0.0
    %222 = vmatpush1.msra.mxu0 0.0
    %223 = vmatprep.subr.mxu0 0.0
    %224 = vmatpush1.msra.mxu0 0.0
    %225 = vmatprep.subr.mxu0 0.0
    %226 = vmatpush1.msra.mxu0 0.0
    %227 = vmatprep.mubr.f32.mxu0 0.0
    %228 = vmatmul.mubr.f32.gmra.mrb[0].mxu0 %v161
    %v229 = vpop.f32.mrb[0].mxu0
    %v230 = vadd.f32 %v149, %v229
    %v231 = vpop.f32.mrb[0].mxu0
    %232 = vdwg.mxu0
    %v233 = vmax.f32 %v230, 0.0
    %v236 = vunpack.c.l.s4 1983009808
    %v237 = vunpack.c.0.s8 %v236
    %v238 = vlaneseq
    %v239 = vshrl.u32 %v238, 7
    %v240 = vsub.s32 %v237, %v239
    %v241 = vrot.slane %v233, %v240
    %242 = vrot.lane.b32.xlu0 %v241, 32
    %v243 = vpop.permute.xlu0 %242
    %vm245 = vcmask 517376
    %246 = vst.msk [vmem:[#allocation2] sm:$0x3] %vm245, %v243
    %v247 = vld [vmem:[%s0] sm:$0x3]
    %s248 = scalar_lea.vmem %s1, 96
    %v249 = vld [vmem:[%s248] sm:$0xff]
    %v250 = vld [vmem:[%s248 + $0x8] sm:$0xff]
    %v251 = vld [vmem:[%s248 + $0x10] sm:$0xff]
    %v252 = vld [vmem:[%s248 + $0x18] sm:$0xff]
    %v253 = vld [vmem:[%s248 + $0x20] sm:$0xff]
    %v254 = vld [vmem:[%s248 + $0x28] sm:$0xff]
    %v255 = vld [vmem:[%s2] sm:$0x1]
    %v257 = vlaneseq
    %v258 = vshrl.u32 %v257, 7
    %v259 = vsub.s32 0, %v258
    %v260 = vrot.slane %v255, %v259
    %v264 = vunpack.c.l.s4 1983009808
    %v265 = vunpack.c.0.s8 %v264
    %v266 = vlaneseq
    %v267 = vshrl.u32 %v266, 7
    %v268 = vsub.s32 %v265, %v267
    %v269 = vrot.slane %v247, %v268
    %270 = vrot.lane.b32.xlu0 %v269, 80
    %v271 = vpop.permute.xlu0 %270
    %v272 = vsel %vm59, %v271, 0
    %274 = vmatprep.subr.mxu0 0.0
    %275 = vmatpush1.msra.mxu0 %v249
    %276 = vmatprep.subr.mxu0 0.0
    %277 = vmatpush1.msra.mxu0 %v250
    %278 = vmatprep.subr.mxu0 0.0
    %279 = vmatpush1.msra.mxu0 %v251
    %280 = vmatprep.subr.mxu0 0.0
    %281 = vmatpush1.msra.mxu0 %v252
    %282 = vmatprep.subr.mxu0 0.0
    %283 = vmatpush1.msra.mxu0 %v253
    %284 = vmatprep.subr.mxu0 0.0
    %285 = vmatpush1.msra.mxu0 %v254
    %286 = vmatprep.subr.mxu0 0.0
    %287 = vmatpush1.msra.mxu0 0.0
    %288 = vmatprep.subr.mxu0 0.0
    %289 = vmatpush1.msra.mxu0 0.0
    %290 = vmatprep.subr.mxu0 0.0
    %291 = vmatpush1.msra.mxu0 0.0
    %292 = vmatprep.subr.mxu0 0.0
    %293 = vmatpush1.msra.mxu0 0.0
    %294 = vmatprep.subr.mxu0 0.0
    %295 = vmatpush1.msra.mxu0 0.0
    %296 = vmatprep.subr.mxu0 0.0
    %297 = vmatpush1.msra.mxu0 0.0
    %298 = vmatprep.subr.mxu0 0.0
    %299 = vmatpush1.msra.mxu0 0.0
    %300 = vmatprep.subr.mxu0 0.0
    %301 = vmatpush1.msra.mxu0 0.0
    %302 = vmatprep.subr.mxu0 0.0
    %303 = vmatpush1.msra.mxu0 0.0
    %304 = vmatprep.subr.mxu0 0.0
    %305 = vmatpush1.msra.mxu0 0.0
    %306 = vmatprep.subr.mxu0 0.0
    %307 = vmatpush1.msra.mxu0 0.0
    %308 = vmatprep.subr.mxu0 0.0
    %309 = vmatpush1.msra.mxu0 0.0
    %310 = vmatprep.subr.mxu0 0.0
    %311 = vmatpush1.msra.mxu0 0.0
    %312 = vmatprep.subr.mxu0 0.0
    %313 = vmatpush1.msra.mxu0 0.0
    %314 = vmatprep.subr.mxu0 0.0
    %315 = vmatpush1.msra.mxu0 0.0
    %316 = vmatprep.subr.mxu0 0.0
    %317 = vmatpush1.msra.mxu0 0.0
    %318 = vmatprep.subr.mxu0 0.0
    %319 = vmatpush1.msra.mxu0 0.0
    %320 = vmatprep.subr.mxu0 0.0
    %321 = vmatpush1.msra.mxu0 0.0
    %322 = vmatprep.subr.mxu0 0.0
    %323 = vmatpush1.msra.mxu0 0.0
    %324 = vmatprep.subr.mxu0 0.0
    %325 = vmatpush1.msra.mxu0 0.0
    %326 = vmatprep.subr.mxu0 0.0
    %327 = vmatpush1.msra.mxu0 0.0
    %328 = vmatprep.subr.mxu0 0.0
    %329 = vmatpush1.msra.mxu0 0.0
    %330 = vmatprep.subr.mxu0 0.0
    %331 = vmatpush1.msra.mxu0 0.0
    %332 = vmatprep.subr.mxu0 0.0
    %333 = vmatpush1.msra.mxu0 0.0
    %334 = vmatprep.subr.mxu0 0.0
    %335 = vmatpush1.msra.mxu0 0.0
    %336 = vmatprep.subr.mxu0 0.0
    %337 = vmatpush1.msra.mxu0 0.0
    %338 = vmatprep.mubr.f32.mxu0 0.0
    %339 = vmatmul.mubr.f32.gmra.mrb[0].mxu0 %v272
    %v340 = vpop.f32.mrb[0].mxu0
    %v341 = vadd.f32 %v260, %v340
    %v342 = vpop.f32.mrb[0].mxu0
    %343 = vdwg.mxu0
    %v344 = vmax.f32 %v341, 0.0
    %v347 = vunpack.c.l.s4 1983009808
    %v348 = vunpack.c.0.s8 %v347
    %v349 = vlaneseq
    %v350 = vshrl.u32 %v349, 7
    %v351 = vsub.s32 %v348, %v350
    %v352 = vrot.slane %v344, %v351
    %353 = vrot.lane.b32.xlu0 %v352, 64
    %v354 = vpop.permute.xlu0 %353
    %vm356 = vcmask 779776
    %357 = vst.msk [vmem:[#allocation2] sm:$0x3] %vm356, %v354
    %v358 = vld [vmem:[%s0] sm:$0x3]
    %s359 = scalar_lea.vmem %s1, 144
    %v360 = vld [vmem:[%s359] sm:$0xff]
    %v361 = vld [vmem:[%s359 + $0x8] sm:$0xff]
    %v362 = vld [vmem:[%s359 + $0x10] sm:$0xff]
    %v363 = vld [vmem:[%s359 + $0x18] sm:$0xff]
    %v364 = vld [vmem:[%s359 + $0x20] sm:$0xff]
    %v365 = vld [vmem:[%s359 + $0x28] sm:$0xff]
    %v366 = vld [vmem:[%s2] sm:$0x1]
    %v368 = vlaneseq
    %v369 = vshrl.u32 %v368, 7
    %v370 = vsub.s32 0, %v369
    %v371 = vrot.slane %v366, %v370
    %v375 = vunpack.c.l.s4 1983009808
    %v376 = vunpack.c.0.s8 %v375
    %v377 = vlaneseq
    %v378 = vshrl.u32 %v377, 7
    %v379 = vsub.s32 %v376, %v378
    %v380 = vrot.slane %v358, %v379
    %381 = vrot.lane.b32.xlu0 %v380, 48
    %v382 = vpop.permute.xlu0 %381
    %v383 = vsel %vm59, %v382, 0
    %385 = vmatprep.subr.mxu0 0.0
    %386 = vmatpush1.msra.mxu0 %v360
    %387 = vmatprep.subr.mxu0 0.0
    %388 = vmatpush1.msra.mxu0 %v361
    %389 = vmatprep.subr.mxu0 0.0
    %390 = vmatpush1.msra.mxu0 %v362
    %391 = vmatprep.subr.mxu0 0.0
    %392 = vmatpush1.msra.mxu0 %v363
    %393 = vmatprep.subr.mxu0 0.0
    %394 = vmatpush1.msra.mxu0 %v364
    %395 = vmatprep.subr.mxu0 0.0
    %396 = vmatpush1.msra.mxu0 %v365
    %397 = vmatprep.subr.mxu0 0.0
    %398 = vmatpush1.msra.mxu0 0.0
    %399 = vmatprep.subr.mxu0 0.0
    %400 = vmatpush1.msra.mxu0 0.0
    %401 = vmatprep.subr.mxu0 0.0
    %402 = vmatpush1.msra.mxu0 0.0
    %403 = vmatprep.subr.mxu0 0.0
    %404 = vmatpush1.msra.mxu0 0.0
    %405 = vmatprep.subr.mxu0 0.0
    %406 = vmatpush1.msra.mxu0 0.0
    %407 = vmatprep.subr.mxu0 0.0
    %408 = vmatpush1.msra.mxu0 0.0
    %409 = vmatprep.subr.mxu0 0.0
    %410 = vmatpush1.msra.mxu0 0.0
    %411 = vmatprep.subr.mxu0 0.0
    %412 = vmatpush1.msra.mxu0 0.0
    %413 = vmatprep.subr.mxu0 0.0
    %414 = vmatpush1.msra.mxu0 0.0
    %415 = vmatprep.subr.mxu0 0.0
    %416 = vmatpush1.msra.mxu0 0.0
    %417 = vmatprep.subr.mxu0 0.0
    %418 = vmatpush1.msra.mxu0 0.0
    %419 = vmatprep.subr.mxu0 0.0
    %420 = vmatpush1.msra.mxu0 0.0
    %421 = vmatprep.subr.mxu0 0.0
    %422 = vmatpush1.msra.mxu0 0.0
    %423 = vmatprep.subr.mxu0 0.0
    %424 = vmatpush1.msra.mxu0 0.0
    %425 = vmatprep.subr.mxu0 0.0
    %426 = vmatpush1.msra.mxu0 0.0
    %427 = vmatprep.subr.mxu0 0.0
    %428 = vmatpush1.msra.mxu0 0.0
    %429 = vmatprep.subr.mxu0 0.0
    %430 = vmatpush1.msra.mxu0 0.0
    %431 = vmatprep.subr.mxu0 0.0
    %432 = vmatpush1.msra.mxu0 0.0
    %433 = vmatprep.subr.mxu0 0.0
    %434 = vmatpush1.msra.mxu0 0.0
    %435 = vmatprep.subr.mxu0 0.0
    %436 = vmatpush1.msra.mxu0 0.0
    %437 = vmatprep.subr.mxu0 0.0
    %438 = vmatpush1.msra.mxu0 0.0
    %439 = vmatprep.subr.mxu0 0.0
    %440 = vmatpush1.msra.mxu0 0.0
    %441 = vmatprep.subr.mxu0 0.0
    %442 = vmatpush1.msra.mxu0 0.0
    %443 = vmatprep.subr.mxu0 0.0
    %444 = vmatpush1.msra.mxu0 0.0
    %445 = vmatprep.subr.mxu0 0.0
    %446 = vmatpush1.msra.mxu0 0.0
    %447 = vmatprep.subr.mxu0 0.0
    %448 = vmatpush1.msra.mxu0 0.0
    %449 = vmatprep.mubr.f32.mxu0 0.0
    %450 = vmatmul.mubr.f32.gmra.mrb[0].mxu0 %v383
    %v451 = vpop.f32.mrb[0].mxu0
    %v452 = vadd.f32 %v371, %v451
    %v453 = vpop.f32.mrb[0].mxu0
    %454 = vdwg.mxu0
    %v455 = vmax.f32 %v452, 0.0
    %v458 = vunpack.c.l.s4 1983009808
    %v459 = vunpack.c.0.s8 %v458
    %v460 = vlaneseq
    %v461 = vshrl.u32 %v460, 7
    %v462 = vsub.s32 %v459, %v461
    %v463 = vrot.slane %v455, %v462
    %464 = vrot.lane.b32.xlu0 %v463, 96
    %v465 = vpop.permute.xlu0 %464
    %vm467 = vcmask 1042176
    %468 = vst.msk [vmem:[#allocation2] sm:$0x3] %vm467, %v465
    %v469 = vld [vmem:[%s0] sm:$0xf]
    %s470 = scalar_lea.vmem %s1, 192
    %v471 = vld [vmem:[%s470] sm:$0xff]
    %v472 = vld [vmem:[%s470 + $0x8] sm:$0xff]
    %v473 = vld [vmem:[%s470 + $0x10] sm:$0xff]
    %v474 = vld [vmem:[%s470 + $0x18] sm:$0xff]
    %v475 = vld [vmem:[%s470 + $0x20] sm:$0xff]
    %v476 = vld [vmem:[%s470 + $0x28] sm:$0xff]
    %v477 = vld [vmem:[%s2] sm:$0x1]
    %v479 = vlaneseq
    %v480 = vshrl.u32 %v479, 7
    %v481 = vsub.s32 0, %v480
    %v482 = vrot.slane %v477, %v481
    %v486 = vunpack.c.l.s4 1983009808
    %v487 = vunpack.c.0.s8 %v486
    %v488 = vlaneseq
    %v489 = vshrl.u32 %v488, 7
    %v490 = vsub.s32 %v487, %v489
    %v491 = vrot.slane %v469, %v490
    %v492 = vcombine.high %v491, %v491
    %493 = vrot.lane.b32.xlu0 %v491, 16
    %v494 = vpop.permute.xlu0 %493
    %495 = vrot.lane.b32.xlu0 %v492, 16
    %v496 = vpop.permute.xlu0 %495
    %vm497 = vcmask 130048
    %v498 = vsel %vm497, %v494, %v496
    %v499 = vsel %vm59, %v498, 0
    %501 = vmatprep.subr.mxu0 0.0
    %502 = vmatpush1.msra.mxu0 %v471
    %503 = vmatprep.subr.mxu0 0.0
    %504 = vmatpush1.msra.mxu0 %v472
    %505 = vmatprep.subr.mxu0 0.0
    %506 = vmatpush1.msra.mxu0 %v473
    %507 = vmatprep.subr.mxu0 0.0
    %508 = vmatpush1.msra.mxu0 %v474
    %509 = vmatprep.subr.mxu0 0.0
    %510 = vmatpush1.msra.mxu0 %v475
    %511 = vmatprep.subr.mxu0 0.0
    %512 = vmatpush1.msra.mxu0 %v476
    %513 = vmatprep.subr.mxu0 0.0
    %514 = vmatpush1.msra.mxu0 0.0
    %515 = vmatprep.subr.mxu0 0.0
    %516 = vmatpush1.msra.mxu0 0.0
    %517 = vmatprep.subr.mxu0 0.0
    %518 = vmatpush1.msra.mxu0 0.0
    %519 = vmatprep.subr.mxu0 0.0
    %520 = vmatpush1.msra.mxu0 0.0
    %521 = vmatprep.subr.mxu0 0.0
    %522 = vmatpush1.msra.mxu0 0.0
    %523 = vmatprep.subr.mxu0 0.0
    %524 = vmatpush1.msra.mxu0 0.0
    %525 = vmatprep.subr.mxu0 0.0
    %526 = vmatpush1.msra.mxu0 0.0
    %527 = vmatprep.subr.mxu0 0.0
    %528 = vmatpush1.msra.mxu0 0.0
    %529 = vmatprep.subr.mxu0 0.0
    %530 = vmatpush1.msra.mxu0 0.0
    %531 = vmatprep.subr.mxu0 0.0
    %532 = vmatpush1.msra.mxu0 0.0
    %533 = vmatprep.subr.mxu0 0.0
    %534 = vmatpush1.msra.mxu0 0.0
    %535 = vmatprep.subr.mxu0 0.0
    %536 = vmatpush1.msra.mxu0 0.0
    %537 = vmatprep.subr.mxu0 0.0
    %538 = vmatpush1.msra.mxu0 0.0
    %539 = vmatprep.subr.mxu0 0.0
    %540 = vmatpush1.msra.mxu0 0.0
    %541 = vmatprep.subr.mxu0 0.0
    %542 = vmatpush1.msra.mxu0 0.0
    %543 = vmatprep.subr.mxu0 0.0
    %544 = vmatpush1.msra.mxu0 0.0
    %545 = vmatprep.subr.mxu0 0.0
    %546 = vmatpush1.msra.mxu0 0.0
    %547 = vmatprep.subr.mxu0 0.0
    %548 = vmatpush1.msra.mxu0 0.0
    %549 = vmatprep.subr.mxu0 0.0
    %550 = vmatpush1.msra.mxu0 0.0
    %551 = vmatprep.subr.mxu0 0.0
    %552 = vmatpush1.msra.mxu0 0.0
    %553 = vmatprep.subr.mxu0 0.0
    %554 = vmatpush1.msra.mxu0 0.0
    %555 = vmatprep.subr.mxu0 0.0
    %556 = vmatpush1.msra.mxu0 0.0
    %557 = vmatprep.subr.mxu0 0.0
    %558 = vmatpush1.msra.mxu0 0.0
    %559 = vmatprep.subr.mxu0 0.0
    %560 = vmatpush1.msra.mxu0 0.0
    %561 = vmatprep.subr.mxu0 0.0
    %562 = vmatpush1.msra.mxu0 0.0
    %563 = vmatprep.subr.mxu0 0.0
    %564 = vmatpush1.msra.mxu0 0.0
    %565 = vmatprep.mubr.f32.mxu0 0.0
    %566 = vmatmul.mubr.f32.gmra.mrb[0].mxu0 %v499
    %v567 = vpop.f32.mrb[0].mxu0
    %v568 = vadd.f32 %v482, %v567
    %v569 = vpop.f32.mrb[0].mxu0
    %570 = vdwg.mxu0
    %v571 = vmax.f32 %v568, 0.0
    %572 = vst.msk [vmem:[#allocation2 + $0x2] sm:$0x3] %vm134, %v571
    %v573 = vld [vmem:[%s0 + $0x2] sm:$0x3]
    %s574 = scalar_lea.vmem %s1, 240
    %v575 = vld [vmem:[%s574] sm:$0xff]
    %v576 = vld [vmem:[%s574 + $0x8] sm:$0xff]
    %v577 = vld [vmem:[%s574 + $0x10] sm:$0xff]
    %v578 = vld [vmem:[%s574 + $0x18] sm:$0xff]
    %v579 = vld [vmem:[%s574 + $0x20] sm:$0xff]
    %v580 = vld [vmem:[%s574 + $0x28] sm:$0xff]
    %v581 = vld [vmem:[%s2] sm:$0x1]
    %v583 = vlaneseq
    %v584 = vshrl.u32 %v583, 7
    %v585 = vsub.s32 0, %v584
    %v586 = vrot.slane %v581, %v585
    %v590 = vunpack.c.l.s4 1983009808
    %v591 = vunpack.c.0.s8 %v590
    %v592 = vlaneseq
    %v593 = vshrl.u32 %v592, 7
    %v594 = vsub.s32 %v591, %v593
    %v595 = vrot.slane %v573, %v594
    %596 = vrot.lane.b32.xlu0 %v595, 112
    %v597 = vpop.permute.xlu0 %596
    %v598 = vsel %vm59, %v597, 0
    %600 = vmatprep.subr.mxu0 0.0
    %601 = vmatpush1.msra.mxu0 %v575
    %602 = vmatprep.subr.mxu0 0.0
    %603 = vmatpush1.msra.mxu0 %v576
    %604 = vmatprep.subr.mxu0 0.0
    %605 = vmatpush1.msra.mxu0 %v577
    %606 = vmatprep.subr.mxu0 0.0
    %607 = vmatpush1.msra.mxu0 %v578
    %608 = vmatprep.subr.mxu0 0.0
    %609 = vmatpush1.msra.mxu0 %v579
    %610 = vmatprep.subr.mxu0 0.0
    %611 = vmatpush1.msra.mxu0 %v580
    %612 = vmatprep.subr.mxu0 0.0
    %613 = vmatpush1.msra.mxu0 0.0
    %614 = vmatprep.subr.mxu0 0.0
    %615 = vmatpush1.msra.mxu0 0.0
    %616 = vmatprep.subr.mxu0 0.0
    %617 = vmatpush1.msra.mxu0 0.0
    %618 = vmatprep.subr.mxu0 0.0
    %619 = vmatpush1.msra.mxu0 0.0
    %620 = vmatprep.subr.mxu0 0.0
    %621 = vmatpush1.msra.mxu0 0.0
    %622 = vmatprep.subr.mxu0 0.0
    %623 = vmatpush1.msra.mxu0 0.0
    %624 = vmatprep.subr.mxu0 0.0
    %625 = vmatpush1.msra.mxu0 0.0
    %626 = vmatprep.subr.mxu0 0.0
    %627 = vmatpush1.msra.mxu0 0.0
    %628 = vmatprep.subr.mxu0 0.0
    %629 = vmatpush1.msra.mxu0 0.0
    %630 = vmatprep.subr.mxu0 0.0
    %631 = vmatpush1.msra.mxu0 0.0
    %632 = vmatprep.subr.mxu0 0.0
    %633 = vmatpush1.msra.mxu0 0.0
    %634 = vmatprep.subr.mxu0 0.0
    %635 = vmatpush1.msra.mxu0 0.0
    %636 = vmatprep.subr.mxu0 0.0
    %637 = vmatpush1.msra.mxu0 0.0
    %638 = vmatprep.subr.mxu0 0.0
    %639 = vmatpush1.msra.mxu0 0.0
    %640 = vmatprep.subr.mxu0 0.0
    %641 = vmatpush1.msra.mxu0 0.0
    %642 = vmatprep.subr.mxu0 0.0
    %643 = vmatpush1.msra.mxu0 0.0
    %644 = vmatprep.subr.mxu0 0.0
    %645 = vmatpush1.msra.mxu0 0.0
    %646 = vmatprep.subr.mxu0 0.0
    %647 = vmatpush1.msra.mxu0 0.0
    %648 = vmatprep.subr.mxu0 0.0
    %649 = vmatpush1.msra.mxu0 0.0
    %650 = vmatprep.subr.mxu0 0.0
    %651 = vmatpush1.msra.mxu0 0.0
    %652 = vmatprep.subr.mxu0 0.0
    %653 = vmatpush1.msra.mxu0 0.0
    %654 = vmatprep.subr.mxu0 0.0
    %655 = vmatpush1.msra.mxu0 0.0
    %656 = vmatprep.subr.mxu0 0.0
    %657 = vmatpush1.msra.mxu0 0.0
    %658 = vmatprep.subr.mxu0 0.0
    %659 = vmatpush1.msra.mxu0 0.0
    %660 = vmatprep.subr.mxu0 0.0
    %661 = vmatpush1.msra.mxu0 0.0
    %662 = vmatprep.subr.mxu0 0.0
    %663 = vmatpush1.msra.mxu0 0.0
    %664 = vmatprep.mubr.f32.mxu0 0.0
    %665 = vmatmul.mubr.f32.gmra.mrb[0].mxu0 %v598
    %v666 = vpop.f32.mrb[0].mxu0
    %v667 = vadd.f32 %v586, %v666
    %v668 = vpop.f32.mrb[0].mxu0
    %669 = vdwg.mxu0
    %v670 = vmax.f32 %v667, 0.0
    %v673 = vunpack.c.l.s4 1983009808
    %v674 = vunpack.c.0.s8 %v673
    %v675 = vlaneseq
    %v676 = vshrl.u32 %v675, 7
    %v677 = vsub.s32 %v674, %v676
    %v678 = vrot.slane %v670, %v677
    %679 = vrot.lane.b32.xlu0 %v678, 32
    %v680 = vpop.permute.xlu0 %679
    %682 = vst.msk [vmem:[#allocation2 + $0x2] sm:$0x3] %vm245, %v680
    %v683 = vld [vmem:[%s0 + $0x2] sm:$0x3]
    %s684 = scalar_lea.vmem %s1, 288
    %v685 = vld [vmem:[%s684] sm:$0xff]
    %v686 = vld [vmem:[%s684 + $0x8] sm:$0xff]
    %v687 = vld [vmem:[%s684 + $0x10] sm:$0xff]
    %v688 = vld [vmem:[%s684 + $0x18] sm:$0xff]
    %v689 = vld [vmem:[%s684 + $0x20] sm:$0xff]
    %v690 = vld [vmem:[%s684 + $0x28] sm:$0xff]
    %v691 = vld [vmem:[%s2] sm:$0x1]
    %v693 = vlaneseq
    %v694 = vshrl.u32 %v693, 7
    %v695 = vsub.s32 0, %v694
    %v696 = vrot.slane %v691, %v695
    %v700 = vunpack.c.l.s4 1983009808
    %v701 = vunpack.c.0.s8 %v700
    %v702 = vlaneseq
    %v703 = vshrl.u32 %v702, 7
    %v704 = vsub.s32 %v701, %v703
    %v705 = vrot.slane %v683, %v704
    %706 = vrot.lane.b32.xlu0 %v705, 80
    %v707 = vpop.permute.xlu0 %706
    %v708 = vsel %vm59, %v707, 0
    %710 = vmatprep.subr.mxu0 0.0
    %711 = vmatpush1.msra.mxu0 %v685
    %712 = vmatprep.subr.mxu0 0.0
    %713 = vmatpush1.msra.mxu0 %v686
    %714 = vmatprep.subr.mxu0 0.0
    %715 = vmatpush1.msra.mxu0 %v687
    %716 = vmatprep.subr.mxu0 0.0
    %717 = vmatpush1.msra.mxu0 %v688
    %718 = vmatprep.subr.mxu0 0.0
    %719 = vmatpush1.msra.mxu0 %v689
    %720 = vmatprep.subr.mxu0 0.0
    %721 = vmatpush1.msra.mxu0 %v690
    %722 = vmatprep.subr.mxu0 0.0
    %723 = vmatpush1.msra.mxu0 0.0
    %724 = vmatprep.subr.mxu0 0.0
    %725 = vmatpush1.msra.mxu0 0.0
    %726 = vmatprep.subr.mxu0 0.0
    %727 = vmatpush1.msra.mxu0 0.0
    %728 = vmatprep.subr.mxu0 0.0
    %729 = vmatpush1.msra.mxu0 0.0
    %730 = vmatprep.subr.mxu0 0.0
    %731 = vmatpush1.msra.mxu0 0.0
    %732 = vmatprep.subr.mxu0 0.0
    %733 = vmatpush1.msra.mxu0 0.0
    %734 = vmatprep.subr.mxu0 0.0
    %735 = vmatpush1.msra.mxu0 0.0
    %736 = vmatprep.subr.mxu0 0.0
    %737 = vmatpush1.msra.mxu0 0.0
    %738 = vmatprep.subr.mxu0 0.0
    %739 = vmatpush1.msra.mxu0 0.0
    %740 = vmatprep.subr.mxu0 0.0
    %741 = vmatpush1.msra.mxu0 0.0
    %742 = vmatprep.subr.mxu0 0.0
    %743 = vmatpush1.msra.mxu0 0.0
    %744 = vmatprep.subr.mxu0 0.0
    %745 = vmatpush1.msra.mxu0 0.0
    %746 = vmatprep.subr.mxu0 0.0
    %747 = vmatpush1.msra.mxu0 0.0
    %748 = vmatprep.subr.mxu0 0.0
    %749 = vmatpush1.msra.mxu0 0.0
    %750 = vmatprep.subr.mxu0 0.0
    %751 = vmatpush1.msra.mxu0 0.0
    %752 = vmatprep.subr.mxu0 0.0
    %753 = vmatpush1.msra.mxu0 0.0
    %754 = vmatprep.subr.mxu0 0.0
    %755 = vmatpush1.msra.mxu0 0.0
    %756 = vmatprep.subr.mxu0 0.0
    %757 = vmatpush1.msra.mxu0 0.0
    %758 = vmatprep.subr.mxu0 0.0
    %759 = vmatpush1.msra.mxu0 0.0
    %760 = vmatprep.subr.mxu0 0.0
    %761 = vmatpush1.msra.mxu0 0.0
    %762 = vmatprep.subr.mxu0 0.0
    %763 = vmatpush1.msra.mxu0 0.0
    %764 = vmatprep.subr.mxu0 0.0
    %765 = vmatpush1.msra.mxu0 0.0
    %766 = vmatprep.subr.mxu0 0.0
    %767 = vmatpush1.msra.mxu0 0.0
    %768 = vmatprep.subr.mxu0 0.0
    %769 = vmatpush1.msra.mxu0 0.0
    %770 = vmatprep.subr.mxu0 0.0
    %771 = vmatpush1.msra.mxu0 0.0
    %772 = vmatprep.subr.mxu0 0.0
    %773 = vmatpush1.msra.mxu0 0.0
    %774 = vmatprep.mubr.f32.mxu0 0.0
    %775 = vmatmul.mubr.f32.gmra.mrb[0].mxu0 %v708
    %v776 = vpop.f32.mrb[0].mxu0
    %v777 = vadd.f32 %v696, %v776
    %v778 = vpop.f32.mrb[0].mxu0
    %779 = vdwg.mxu0
    %v780 = vmax.f32 %v777, 0.0
    %v783 = vunpack.c.l.s4 1983009808
    %v784 = vunpack.c.0.s8 %v783
    %v785 = vlaneseq
    %v786 = vshrl.u32 %v785, 7
    %v787 = vsub.s32 %v784, %v786
    %v788 = vrot.slane %v780, %v787
    %789 = vrot.lane.b32.xlu0 %v788, 64
    %v790 = vpop.permute.xlu0 %789
    %792 = vst.msk [vmem:[#allocation2 + $0x2] sm:$0x3] %vm356, %v790
    %v793 = vld [vmem:[%s0 + $0x2] sm:$0x3]
    %s794 = scalar_lea.vmem %s1, 336
    %v795 = vld [vmem:[%s794] sm:$0xff]
    %v796 = vld [vmem:[%s794 + $0x8] sm:$0xff]
    %v797 = vld [vmem:[%s794 + $0x10] sm:$0xff]
    %v798 = vld [vmem:[%s794 + $0x18] sm:$0xff]
    %v799 = vld [vmem:[%s794 + $0x20] sm:$0xff]
    %v800 = vld [vmem:[%s794 + $0x28] sm:$0xff]
    %v801 = vld [vmem:[%s2] sm:$0x1]
    %v803 = vlaneseq
    %v804 = vshrl.u32 %v803, 7
    %v805 = vsub.s32 0, %v804
    %v806 = vrot.slane %v801, %v805
    %v810 = vunpack.c.l.s4 1983009808
    %v811 = vunpack.c.0.s8 %v810
    %v812 = vlaneseq
    %v813 = vshrl.u32 %v812, 7
    %v814 = vsub.s32 %v811, %v813
    %v815 = vrot.slane %v793, %v814
    %816 = vrot.lane.b32.xlu0 %v815, 48
    %v817 = vpop.permute.xlu0 %816
    %v818 = vsel %vm59, %v817, 0
    %820 = vmatprep.subr.mxu0 0.0
    %821 = vmatpush1.msra.mxu0 %v795
    %822 = vmatprep.subr.mxu0 0.0
    %823 = vmatpush1.msra.mxu0 %v796
    %824 = vmatprep.subr.mxu0 0.0
    %825 = vmatpush1.msra.mxu0 %v797
    %826 = vmatprep.subr.mxu0 0.0
    %827 = vmatpush1.msra.mxu0 %v798
    %828 = vmatprep.subr.mxu0 0.0
    %829 = vmatpush1.msra.mxu0 %v799
    %830 = vmatprep.subr.mxu0 0.0
    %831 = vmatpush1.msra.mxu0 %v800
    %832 = vmatprep.subr.mxu0 0.0
    %833 = vmatpush1.msra.mxu0 0.0
    %834 = vmatprep.subr.mxu0 0.0
    %835 = vmatpush1.msra.mxu0 0.0
    %836 = vmatprep.subr.mxu0 0.0
    %837 = vmatpush1.msra.mxu0 0.0
    %838 = vmatprep.subr.mxu0 0.0
    %839 = vmatpush1.msra.mxu0 0.0
    %840 = vmatprep.subr.mxu0 0.0
    %841 = vmatpush1.msra.mxu0 0.0
    %842 = vmatprep.subr.mxu0 0.0
    %843 = vmatpush1.msra.mxu0 0.0
    %844 = vmatprep.subr.mxu0 0.0
    %845 = vmatpush1.msra.mxu0 0.0
    %846 = vmatprep.subr.mxu0 0.0
    %847 = vmatpush1.msra.mxu0 0.0
    %848 = vmatprep.subr.mxu0 0.0
    %849 = vmatpush1.msra.mxu0 0.0
    %850 = vmatprep.subr.mxu0 0.0
    %851 = vmatpush1.msra.mxu0 0.0
    %852 = vmatprep.subr.mxu0 0.0
    %853 = vmatpush1.msra.mxu0 0.0
    %854 = vmatprep.subr.mxu0 0.0
    %855 = vmatpush1.msra.mxu0 0.0
    %856 = vmatprep.subr.mxu0 0.0
    %857 = vmatpush1.msra.mxu0 0.0
    %858 = vmatprep.subr.mxu0 0.0
    %859 = vmatpush1.msra.mxu0 0.0
    %860 = vmatprep.subr.mxu0 0.0
    %861 = vmatpush1.msra.mxu0 0.0
    %862 = vmatprep.subr.mxu0 0.0
    %863 = vmatpush1.msra.mxu0 0.0
    %864 = vmatprep.subr.mxu0 0.0
    %865 = vmatpush1.msra.mxu0 0.0
    %866 = vmatprep.subr.mxu0 0.0
    %867 = vmatpush1.msra.mxu0 0.0
    %868 = vmatprep.subr.mxu0 0.0
    %869 = vmatpush1.msra.mxu0 0.0
    %870 = vmatprep.subr.mxu0 0.0
    %871 = vmatpush1.msra.mxu0 0.0
    %872 = vmatprep.subr.mxu0 0.0
    %873 = vmatpush1.msra.mxu0 0.0
    %874 = vmatprep.subr.mxu0 0.0
    %875 = vmatpush1.msra.mxu0 0.0
    %876 = vmatprep.subr.mxu0 0.0
    %877 = vmatpush1.msra.mxu0 0.0
    %878 = vmatprep.subr.mxu0 0.0
    %879 = vmatpush1.msra.mxu0 0.0
    %880 = vmatprep.subr.mxu0 0.0
    %881 = vmatpush1.msra.mxu0 0.0
    %882 = vmatprep.subr.mxu0 0.0
    %883 = vmatpush1.msra.mxu0 0.0
    %884 = vmatprep.mubr.f32.mxu0 0.0
    %885 = vmatmul.mubr.f32.gmra.mrb[0].mxu0 %v818
    %v886 = vpop.f32.mrb[0].mxu0
    %v887 = vadd.f32 %v806, %v886
    %v888 = vpop.f32.mrb[0].mxu0
    %889 = vdwg.mxu0
    %v890 = vmax.f32 %v887, 0.0
    %v893 = vunpack.c.l.s4 1983009808
    %v894 = vunpack.c.0.s8 %v893
    %v895 = vlaneseq
    %v896 = vshrl.u32 %v895, 7
    %v897 = vsub.s32 %v894, %v896
    %v898 = vrot.slane %v890, %v897
    %899 = vrot.lane.b32.xlu0 %v898, 96
    %v900 = vpop.permute.xlu0 %899
    %902 = vst.msk [vmem:[#allocation2 + $0x2] sm:$0x3] %vm467, %v900
    %v903 = vld [vmem:[%s0 + $0x2] sm:$0xf]
    %s904 = scalar_lea.vmem %s1, 384
    %v905 = vld [vmem:[%s904] sm:$0xff]
    %v906 = vld [vmem:[%s904 + $0x8] sm:$0xff]
    %v907 = vld [vmem:[%s904 + $0x10] sm:$0xff]
    %v908 = vld [vmem:[%s904 + $0x18] sm:$0xff]
    %v909 = vld [vmem:[%s904 + $0x20] sm:$0xff]
    %v910 = vld [vmem:[%s904 + $0x28] sm:$0xff]
    %v911 = vld [vmem:[%s2] sm:$0x1]
    %v913 = vlaneseq
    %v914 = vshrl.u32 %v913, 7
    %v915 = vsub.s32 0, %v914
    %v916 = vrot.slane %v911, %v915
    %v920 = vunpack.c.l.s4 1983009808
    %v921 = vunpack.c.0.s8 %v920
    %v922 = vlaneseq
    %v923 = vshrl.u32 %v922, 7
    %v924 = vsub.s32 %v921, %v923
    %v925 = vrot.slane %v903, %v924
    %v926 = vcombine.high %v925, %v925
    %927 = vrot.lane.b32.xlu0 %v925, 16
    %v928 = vpop.permute.xlu0 %927
    %929 = vrot.lane.b32.xlu0 %v926, 16
    %v930 = vpop.permute.xlu0 %929
    %v931 = vsel %vm497, %v928, %v930
    %v932 = vsel %vm59, %v931, 0
    %934 = vmatprep.subr.mxu0 0.0
    %935 = vmatpush1.msra.mxu0 %v905
    %936 = vmatprep.subr.mxu0 0.0
    %937 = vmatpush1.msra.mxu0 %v906
    %938 = vmatprep.subr.mxu0 0.0
    %939 = vmatpush1.msra.mxu0 %v907
    %940 = vmatprep.subr.mxu0 0.0
    %941 = vmatpush1.msra.mxu0 %v908
    %942 = vmatprep.subr.mxu0 0.0
    %943 = vmatpush1.msra.mxu0 %v909
    %944 = vmatprep.subr.mxu0 0.0
    %945 = vmatpush1.msra.mxu0 %v910
    %946 = vmatprep.subr.mxu0 0.0
    %947 = vmatpush1.msra.mxu0 0.0
    %948 = vmatprep.subr.mxu0 0.0
    %949 = vmatpush1.msra.mxu0 0.0
    %950 = vmatprep.subr.mxu0 0.0
    %951 = vmatpush1.msra.mxu0 0.0
    %952 = vmatprep.subr.mxu0 0.0
    %953 = vmatpush1.msra.mxu0 0.0
    %954 = vmatprep.subr.mxu0 0.0
    %955 = vmatpush1.msra.mxu0 0.0
    %956 = vmatprep.subr.mxu0 0.0
    %957 = vmatpush1.msra.mxu0 0.0
    %958 = vmatprep.subr.mxu0 0.0
    %959 = vmatpush1.msra.mxu0 0.0
    %960 = vmatprep.subr.mxu0 0.0
    %961 = vmatpush1.msra.mxu0 0.0
    %962 = vmatprep.subr.mxu0 0.0
    %963 = vmatpush1.msra.mxu0 0.0
    %964 = vmatprep.subr.mxu0 0.0
    %965 = vmatpush1.msra.mxu0 0.0
    %966 = vmatprep.subr.mxu0 0.0
    %967 = vmatpush1.msra.mxu0 0.0
    %968 = vmatprep.subr.mxu0 0.0
    %969 = vmatpush1.msra.mxu0 0.0
    %970 = vmatprep.subr.mxu0 0.0
    %971 = vmatpush1.msra.mxu0 0.0
    %972 = vmatprep.subr.mxu0 0.0
    %973 = vmatpush1.msra.mxu0 0.0
    %974 = vmatprep.subr.mxu0 0.0
    %975 = vmatpush1.msra.mxu0 0.0
    %976 = vmatprep.subr.mxu0 0.0
    %977 = vmatpush1.msra.mxu0 0.0
    %978 = vmatprep.subr.mxu0 0.0
    %979 = vmatpush1.msra.mxu0 0.0
    %980 = vmatprep.subr.mxu0 0.0
    %981 = vmatpush1.msra.mxu0 0.0
    %982 = vmatprep.subr.mxu0 0.0
    %983 = vmatpush1.msra.mxu0 0.0
    %984 = vmatprep.subr.mxu0 0.0
    %985 = vmatpush1.msra.mxu0 0.0
    %986 = vmatprep.subr.mxu0 0.0
    %987 = vmatpush1.msra.mxu0 0.0
    %988 = vmatprep.subr.mxu0 0.0
    %989 = vmatpush1.msra.mxu0 0.0
    %990 = vmatprep.subr.mxu0 0.0
    %991 = vmatpush1.msra.mxu0 0.0
    %992 = vmatprep.subr.mxu0 0.0
    %993 = vmatpush1.msra.mxu0 0.0
    %994 = vmatprep.subr.mxu0 0.0
    %995 = vmatpush1.msra.mxu0 0.0
    %996 = vmatprep.subr.mxu0 0.0
    %997 = vmatpush1.msra.mxu0 0.0
    %998 = vmatprep.mubr.f32.mxu0 0.0
    %999 = vmatmul.mubr.f32.gmra.mrb[0].mxu0 %v932
    %v1000 = vpop.f32.mrb[0].mxu0
    %v1001 = vadd.f32 %v916, %v1000
    %v1002 = vpop.f32.mrb[0].mxu0
    %1003 = vdwg.mxu0
    %v1004 = vmax.f32 %v1001, 0.0
    %1005 = vst.msk [vmem:[#allocation2 + $0x4] sm:$0x3] %vm134, %v1004
    %v1006 = vld [vmem:[%s0 + $0x4] sm:$0x3]
    %s1007 = scalar_lea.vmem %s1, 432
    %v1008 = vld [vmem:[%s1007] sm:$0xff]
    %v1009 = vld [vmem:[%s1007 + $0x8] sm:$0xff]
    %v1010 = vld [vmem:[%s1007 + $0x10] sm:$0xff]
    %v1011 = vld [vmem:[%s1007 + $0x18] sm:$0xff]
    %v1012 = vld [vmem:[%s1007 + $0x20] sm:$0xff]
    %v1013 = vld [vmem:[%s1007 + $0x28] sm:$0xff]
    %v1014 = vld [vmem:[%s2] sm:$0x1]
    %v1016 = vlaneseq
    %v1017 = vshrl.u32 %v1016, 7
    %v1018 = vsub.s32 0, %v1017
    %v1019 = vrot.slane %v1014, %v1018
    %v1023 = vunpack.c.l.s4 1983009808
    %v1024 = vunpack.c.0.s8 %v1023
    %v1025 = vlaneseq
    %v1026 = vshrl.u32 %v1025, 7
    %v1027 = vsub.s32 %v1024, %v1026
    %v1028 = vrot.slane %v1006, %v1027
    %1029 = vrot.lane.b32.xlu0 %v1028, 112
    %v1030 = vpop.permute.xlu0 %1029
    %v1031 = vsel %vm59, %v1030, 0
    %1033 = vmatprep.subr.mxu0 0.0
    %1034 = vmatpush1.msra.mxu0 %v1008
    %1035 = vmatprep.subr.mxu0 0.0
    %1036 = vmatpush1.msra.mxu0 %v1009
    %1037 = vmatprep.subr.mxu0 0.0
    %1038 = vmatpush1.msra.mxu0 %v1010
    %1039 = vmatprep.subr.mxu0 0.0
    %1040 = vmatpush1.msra.mxu0 %v1011
    %1041 = vmatprep.subr.mxu0 0.0
    %1042 = vmatpush1.msra.mxu0 %v1012
    %1043 = vmatprep.subr.mxu0 0.0
    %1044 = vmatpush1.msra.mxu0 %v1013
    %1045 = vmatprep.subr.mxu0 0.0
    %1046 = vmatpush1.msra.mxu0 0.0
    %1047 = vmatprep.subr.mxu0 0.0
    %1048 = vmatpush1.msra.mxu0 0.0
    %1049 = vmatprep.subr.mxu0 0.0
    %1050 = vmatpush1.msra.mxu0 0.0
    %1051 = vmatprep.subr.mxu0 0.0
    %1052 = vmatpush1.msra.mxu0 0.0
    %1053 = vmatprep.subr.mxu0 0.0
    %1054 = vmatpush1.msra.mxu0 0.0
    %1055 = vmatprep.subr.mxu0 0.0
    %1056 = vmatpush1.msra.mxu0 0.0
    %1057 = vmatprep.subr.mxu0 0.0
    %1058 = vmatpush1.msra.mxu0 0.0
    %1059 = vmatprep.subr.mxu0 0.0
    %1060 = vmatpush1.msra.mxu0 0.0
    %1061 = vmatprep.subr.mxu0 0.0
    %1062 = vmatpush1.msra.mxu0 0.0
    %1063 = vmatprep.subr.mxu0 0.0
    %1064 = vmatpush1.msra.mxu0 0.0
    %1065 = vmatprep.subr.mxu0 0.0
    %1066 = vmatpush1.msra.mxu0 0.0
    %1067 = vmatprep.subr.mxu0 0.0
    %1068 = vmatpush1.msra.mxu0 0.0
    %1069 = vmatprep.subr.mxu0 0.0
    %1070 = vmatpush1.msra.mxu0 0.0
    %1071 = vmatprep.subr.mxu0 0.0
    %1072 = vmatpush1.msra.mxu0 0.0
    %1073 = vmatprep.subr.mxu0 0.0
    %1074 = vmatpush1.msra.mxu0 0.0
    %1075 = vmatprep.subr.mxu0 0.0
    %1076 = vmatpush1.msra.mxu0 0.0
    %1077 = vmatprep.subr.mxu0 0.0
    %1078 = vmatpush1.msra.mxu0 0.0
    %1079 = vmatprep.subr.mxu0 0.0
    %1080 = vmatpush1.msra.mxu0 0.0
    %1081 = vmatprep.subr.mxu0 0.0
    %1082 = vmatpush1.msra.mxu0 0.0
    %1083 = vmatprep.subr.mxu0 0.0
    %1084 = vmatpush1.msra.mxu0 0.0
    %1085 = vmatprep.subr.mxu0 0.0
    %1086 = vmatpush1.msra.mxu0 0.0
    %1087 = vmatprep.subr.mxu0 0.0
    %1088 = vmatpush1.msra.mxu0 0.0
    %1089 = vmatprep.subr.mxu0 0.0
    %1090 = vmatpush1.msra.mxu0 0.0
    %1091 = vmatprep.subr.mxu0 0.0
    %1092 = vmatpush1.msra.mxu0 0.0
    %1093 = vmatprep.subr.mxu0 0.0
    %1094 = vmatpush1.msra.mxu0 0.0
    %1095 = vmatprep.subr.mxu0 0.0
    %1096 = vmatpush1.msra.mxu0 0.0
    %1097 = vmatprep.mubr.f32.mxu0 0.0
    %1098 = vmatmul.mubr.f32.gmra.mrb[0].mxu0 %v1031
    %v1099 = vpop.f32.mrb[0].mxu0
    %v1100 = vadd.f32 %v1019, %v1099
    %v1101 = vpop.f32.mrb[0].mxu0
    %1102 = vdwg.mxu0
    %v1103 = vmax.f32 %v1100, 0.0
    %v1106 = vunpack.c.l.s4 1983009808
    %v1107 = vunpack.c.0.s8 %v1106
    %v1108 = vlaneseq
    %v1109 = vshrl.u32 %v1108, 7
    %v1110 = vsub.s32 %v1107, %v1109
    %v1111 = vrot.slane %v1103, %v1110
    %1112 = vrot.lane.b32.xlu0 %v1111, 32
    %v1113 = vpop.permute.xlu0 %1112
    %1115 = vst.msk [vmem:[#allocation2 + $0x4] sm:$0x3] %vm245, %v1113
    %v1116 = vld [vmem:[%s0 + $0x4] sm:$0x3]
    %s1117 = scalar_lea.vmem %s1, 480
    %v1118 = vld [vmem:[%s1117] sm:$0xff]
    %v1119 = vld [vmem:[%s1117 + $0x8] sm:$0xff]
    %v1120 = vld [vmem:[%s1117 + $0x10] sm:$0xff]
    %v1121 = vld [vmem:[%s1117 + $0x18] sm:$0xff]
    %v1122 = vld [vmem:[%s1117 + $0x20] sm:$0xff]
    %v1123 = vld [vmem:[%s1117 + $0x28] sm:$0xff]
    %v1124 = vld [vmem:[%s2] sm:$0x1]
    %v1126 = vlaneseq
    %v1127 = vshrl.u32 %v1126, 7
    %v1128 = vsub.s32 0, %v1127
    %v1129 = vrot.slane %v1124, %v1128
    %v1133 = vunpack.c.l.s4 1983009808
    %v1134 = vunpack.c.0.s8 %v1133
    %v1135 = vlaneseq
    %v1136 = vshrl.u32 %v1135, 7
    %v1137 = vsub.s32 %v1134, %v1136
    %v1138 = vrot.slane %v1116, %v1137
    %1139 = vrot.lane.b32.xlu0 %v1138, 80
    %v1140 = vpop.permute.xlu0 %1139
    %v1141 = vsel %vm59, %v1140, 0
    %1143 = vmatprep.subr.mxu0 0.0
    %1144 = vmatpush1.msra.mxu0 %v1118
    %1145 = vmatprep.subr.mxu0 0.0
    %1146 = vmatpush1.msra.mxu0 %v1119
    %1147 = vmatprep.subr.mxu0 0.0
    %1148 = vmatpush1.msra.mxu0 %v1120
    %1149 = vmatprep.subr.mxu0 0.0
    %1150 = vmatpush1.msra.mxu0 %v1121
    %1151 = vmatprep.subr.mxu0 0.0
    %1152 = vmatpush1.msra.mxu0 %v1122
    %1153 = vmatprep.subr.mxu0 0.0
    %1154 = vmatpush1.msra.mxu0 %v1123
    %1155 = vmatprep.subr.mxu0 0.0
    %1156 = vmatpush1.msra.mxu0 0.0
    %1157 = vmatprep.subr.mxu0 0.0
    %1158 = vmatpush1.msra.mxu0 0.0
    %1159 = vmatprep.subr.mxu0 0.0
    %1160 = vmatpush1.msra.mxu0 0.0
    %1161 = vmatprep.subr.mxu0 0.0
    %1162 = vmatpush1.msra.mxu0 0.0
    %1163 = vmatprep.subr.mxu0 0.0
    %1164 = vmatpush1.msra.mxu0 0.0
    %1165 = vmatprep.subr.mxu0 0.0
    %1166 = vmatpush1.msra.mxu0 0.0
    %1167 = vmatprep.subr.mxu0 0.0
    %1168 = vmatpush1.msra.mxu0 0.0
    %1169 = vmatprep.subr.mxu0 0.0
    %1170 = vmatpush1.msra.mxu0 0.0
    %1171 = vmatprep.subr.mxu0 0.0
    %1172 = vmatpush1.msra.mxu0 0.0
    %1173 = vmatprep.subr.mxu0 0.0
    %1174 = vmatpush1.msra.mxu0 0.0
    %1175 = vmatprep.subr.mxu0 0.0
    %1176 = vmatpush1.msra.mxu0 0.0
    %1177 = vmatprep.subr.mxu0 0.0
    %1178 = vmatpush1.msra.mxu0 0.0
    %1179 = vmatprep.subr.mxu0 0.0
    %1180 = vmatpush1.msra.mxu0 0.0
    %1181 = vmatprep.subr.mxu0 0.0
    %1182 = vmatpush1.msra.mxu0 0.0
    %1183 = vmatprep.subr.mxu0 0.0
    %1184 = vmatpush1.msra.mxu0 0.0
    %1185 = vmatprep.subr.mxu0 0.0
    %1186 = vmatpush1.msra.mxu0 0.0
    %1187 = vmatprep.subr.mxu0 0.0
    %1188 = vmatpush1.msra.mxu0 0.0
    %1189 = vmatprep.subr.mxu0 0.0
    %1190 = vmatpush1.msra.mxu0 0.0
    %1191 = vmatprep.subr.mxu0 0.0
    %1192 = vmatpush1.msra.mxu0 0.0
    %1193 = vmatprep.subr.mxu0 0.0
    %1194 = vmatpush1.msra.mxu0 0.0
    %1195 = vmatprep.subr.mxu0 0.0
    %1196 = vmatpush1.msra.mxu0 0.0
    %1197 = vmatprep.subr.mxu0 0.0
    %1198 = vmatpush1.msra.mxu0 0.0
    %1199 = vmatprep.subr.mxu0 0.0
    %1200 = vmatpush1.msra.mxu0 0.0
    %1201 = vmatprep.subr.mxu0 0.0
    %1202 = vmatpush1.msra.mxu0 0.0
    %1203 = vmatprep.subr.mxu0 0.0
    %1204 = vmatpush1.msra.mxu0 0.0
    %1205 = vmatprep.subr.mxu0 0.0
    %1206 = vmatpush1.msra.mxu0 0.0
    %1207 = vmatprep.mubr.f32.mxu0 0.0
    %1208 = vmatmul.mubr.f32.gmra.mrb[0].mxu0 %v1141
    %v1209 = vpop.f32.mrb[0].mxu0
    %v1210 = vadd.f32 %v1129, %v1209
    %v1211 = vpop.f32.mrb[0].mxu0
    %1212 = vdwg.mxu0
    %v1213 = vmax.f32 %v1210, 0.0
    %v1216 = vunpack.c.l.s4 1983009808
    %v1217 = vunpack.c.0.s8 %v1216
    %v1218 = vlaneseq
    %v1219 = vshrl.u32 %v1218, 7
    %v1220 = vsub.s32 %v1217, %v1219
    %v1221 = vrot.slane %v1213, %v1220
    %1222 = vrot.lane.b32.xlu0 %v1221, 64
    %v1223 = vpop.permute.xlu0 %1222
    %1225 = vst.msk [vmem:[#allocation2 + $0x4] sm:$0x3] %vm356, %v1223
    %v1226 = vld [vmem:[%s0 + $0x4] sm:$0x3]
    %s1227 = scalar_lea.vmem %s1, 528
    %v1228 = vld [vmem:[%s1227] sm:$0xff]
    %v1229 = vld [vmem:[%s1227 + $0x8] sm:$0xff]
    %v1230 = vld [vmem:[%s1227 + $0x10] sm:$0xff]
    %v1231 = vld [vmem:[%s1227 + $0x18] sm:$0xff]
    %v1232 = vld [vmem:[%s1227 + $0x20] sm:$0xff]
    %v1233 = vld [vmem:[%s1227 + $0x28] sm:$0xff]
    %v1234 = vld [vmem:[%s2] sm:$0x1]
    %v1236 = vlaneseq
    %v1237 = vshrl.u32 %v1236, 7
    %v1238 = vsub.s32 0, %v1237
    %v1239 = vrot.slane %v1234, %v1238
    %v1243 = vunpack.c.l.s4 1983009808
    %v1244 = vunpack.c.0.s8 %v1243
    %v1245 = vlaneseq
    %v1246 = vshrl.u32 %v1245, 7
    %v1247 = vsub.s32 %v1244, %v1246
    %v1248 = vrot.slane %v1226, %v1247
    %1249 = vrot.lane.b32.xlu0 %v1248, 48
    %v1250 = vpop.permute.xlu0 %1249
    %v1251 = vsel %vm59, %v1250, 0
    %1253 = vmatprep.subr.mxu0 0.0
    %1254 = vmatpush1.msra.mxu0 %v1228
    %1255 = vmatprep.subr.mxu0 0.0
    %1256 = vmatpush1.msra.mxu0 %v1229
    %1257 = vmatprep.subr.mxu0 0.0
    %1258 = vmatpush1.msra.mxu0 %v1230
    %1259 = vmatprep.subr.mxu0 0.0
    %1260 = vmatpush1.msra.mxu0 %v1231
    %1261 = vmatprep.subr.mxu0 0.0
    %1262 = vmatpush1.msra.mxu0 %v1232
    %1263 = vmatprep.subr.mxu0 0.0
    %1264 = vmatpush1.msra.mxu0 %v1233
    %1265 = vmatprep.subr.mxu0 0.0
    %1266 = vmatpush1.msra.mxu0 0.0
    %1267 = vmatprep.subr.mxu0 0.0
    %1268 = vmatpush1.msra.mxu0 0.0
    %1269 = vmatprep.subr.mxu0 0.0
    %1270 = vmatpush1.msra.mxu0 0.0
    %1271 = vmatprep.subr.mxu0 0.0
    %1272 = vmatpush1.msra.mxu0 0.0
    %1273 = vmatprep.subr.mxu0 0.0
    %1274 = vmatpush1.msra.mxu0 0.0
    %1275 = vmatprep.subr.mxu0 0.0
    %1276 = vmatpush1.msra.mxu0 0.0
    %1277 = vmatprep.subr.mxu0 0.0
    %1278 = vmatpush1.msra.mxu0 0.0
    %1279 = vmatprep.subr.mxu0 0.0
    %1280 = vmatpush1.msra.mxu0 0.0
    %1281 = vmatprep.subr.mxu0 0.0
    %1282 = vmatpush1.msra.mxu0 0.0
    %1283 = vmatprep.subr.mxu0 0.0
    %1284 = vmatpush1.msra.mxu0 0.0
    %1285 = vmatprep.subr.mxu0 0.0
    %1286 = vmatpush1.msra.mxu0 0.0
    %1287 = vmatprep.subr.mxu0 0.0
    %1288 = vmatpush1.msra.mxu0 0.0
    %1289 = vmatprep.subr.mxu0 0.0
    %1290 = vmatpush1.msra.mxu0 0.0
    %1291 = vmatprep.subr.mxu0 0.0
    %1292 = vmatpush1.msra.mxu0 0.0
    %1293 = vmatprep.subr.mxu0 0.0
    %1294 = vmatpush1.msra.mxu0 0.0
    %1295 = vmatprep.subr.mxu0 0.0
    %1296 = vmatpush1.msra.mxu0 0.0
    %1297 = vmatprep.subr.mxu0 0.0
    %1298 = vmatpush1.msra.mxu0 0.0
    %1299 = vmatprep.subr.mxu0 0.0
    %1300 = vmatpush1.msra.mxu0 0.0
    %1301 = vmatprep.subr.mxu0 0.0
    %1302 = vmatpush1.msra.mxu0 0.0
    %1303 = vmatprep.subr.mxu0 0.0
    %1304 = vmatpush1.msra.mxu0 0.0
    %1305 = vmatprep.subr.mxu0 0.0
    %1306 = vmatpush1.msra.mxu0 0.0
    %1307 = vmatprep.subr.mxu0 0.0
    %1308 = vmatpush1.msra.mxu0 0.0
    %1309 = vmatprep.subr.mxu0 0.0
    %1310 = vmatpush1.msra.mxu0 0.0
    %1311 = vmatprep.subr.mxu0 0.0
    %1312 = vmatpush1.msra.mxu0 0.0
    %1313 = vmatprep.subr.mxu0 0.0
    %1314 = vmatpush1.msra.mxu0 0.0
    %1315 = vmatprep.subr.mxu0 0.0
    %1316 = vmatpush1.msra.mxu0 0.0
    %1317 = vmatprep.mubr.f32.mxu0 0.0
    %1318 = vmatmul.mubr.f32.gmra.mrb[0].mxu0 %v1251
    %v1319 = vpop.f32.mrb[0].mxu0
    %v1320 = vadd.f32 %v1239, %v1319
    %v1321 = vpop.f32.mrb[0].mxu0
    %1322 = vdwg.mxu0
    %v1323 = vmax.f32 %v1320, 0.0
    %v1326 = vunpack.c.l.s4 1983009808
    %v1327 = vunpack.c.0.s8 %v1326
    %v1328 = vlaneseq
    %v1329 = vshrl.u32 %v1328, 7
    %v1330 = vsub.s32 %v1327, %v1329
    %v1331 = vrot.slane %v1323, %v1330
    %1332 = vrot.lane.b32.xlu0 %v1331, 96
    %v1333 = vpop.permute.xlu0 %1332
    %1335 = vst.msk [vmem:[#allocation2 + $0x4] sm:$0x3] %vm467, %v1333
    %v1336 = vld [vmem:[%s0 + $0x4] sm:$0xf]
    %s1337 = scalar_lea.vmem %s1, 576
    %v1338 = vld [vmem:[%s1337] sm:$0xff]
    %v1339 = vld [vmem:[%s1337 + $0x8] sm:$0xff]
    %v1340 = vld [vmem:[%s1337 + $0x10] sm:$0xff]
    %v1341 = vld [vmem:[%s1337 + $0x18] sm:$0xff]
    %v1342 = vld [vmem:[%s1337 + $0x20] sm:$0xff]
    %v1343 = vld [vmem:[%s1337 + $0x28] sm:$0xff]
    %v1344 = vld [vmem:[%s2] sm:$0x1]
    %v1346 = vlaneseq
    %v1347 = vshrl.u32 %v1346, 7
    %v1348 = vsub.s32 0, %v1347
    %v1349 = vrot.slane %v1344, %v1348
    %v1353 = vunpack.c.l.s4 1983009808
    %v1354 = vunpack.c.0.s8 %v1353
    %v1355 = vlaneseq
    %v1356 = vshrl.u32 %v1355, 7
    %v1357 = vsub.s32 %v1354, %v1356
    %v1358 = vrot.slane %v1336, %v1357
    %v1359 = vcombine.high %v1358, %v1358
    %1360 = vrot.lane.b32.xlu0 %v1358, 16
    %v1361 = vpop.permute.xlu0 %1360
    %1362 = vrot.lane.b32.xlu0 %v1359, 16
    %v1363 = vpop.permute.xlu0 %1362
    %v1364 = vsel %vm497, %v1361, %v1363
    %v1365 = vsel %vm59, %v1364, 0
    %1367 = vmatprep.subr.mxu0 0.0
    %1368 = vmatpush1.msra.mxu0 %v1338
    %1369 = vmatprep.subr.mxu0 0.0
    %1370 = vmatpush1.msra.mxu0 %v1339
    %1371 = vmatprep.subr.mxu0 0.0
    %1372 = vmatpush1.msra.mxu0 %v1340
    %1373 = vmatprep.subr.mxu0 0.0
    %1374 = vmatpush1.msra.mxu0 %v1341
    %1375 = vmatprep.subr.mxu0 0.0
    %1376 = vmatpush1.msra.mxu0 %v1342
    %1377 = vmatprep.subr.mxu0 0.0
    %1378 = vmatpush1.msra.mxu0 %v1343
    %1379 = vmatprep.subr.mxu0 0.0
    %1380 = vmatpush1.msra.mxu0 0.0
    %1381 = vmatprep.subr.mxu0 0.0
    %1382 = vmatpush1.msra.mxu0 0.0
    %1383 = vmatprep.subr.mxu0 0.0
    %1384 = vmatpush1.msra.mxu0 0.0
    %1385 = vmatprep.subr.mxu0 0.0
    %1386 = vmatpush1.msra.mxu0 0.0
    %1387 = vmatprep.subr.mxu0 0.0
    %1388 = vmatpush1.msra.mxu0 0.0
    %1389 = vmatprep.subr.mxu0 0.0
    %1390 = vmatpush1.msra.mxu0 0.0
    %1391 = vmatprep.subr.mxu0 0.0
    %1392 = vmatpush1.msra.mxu0 0.0
    %1393 = vmatprep.subr.mxu0 0.0
    %1394 = vmatpush1.msra.mxu0 0.0
    %1395 = vmatprep.subr.mxu0 0.0
    %1396 = vmatpush1.msra.mxu0 0.0
    %1397 = vmatprep.subr.mxu0 0.0
    %1398 = vmatpush1.msra.mxu0 0.0
    %1399 = vmatprep.subr.mxu0 0.0
    %1400 = vmatpush1.msra.mxu0 0.0
    %1401 = vmatprep.subr.mxu0 0.0
    %1402 = vmatpush1.msra.mxu0 0.0
    %1403 = vmatprep.subr.mxu0 0.0
    %1404 = vmatpush1.msra.mxu0 0.0
    %1405 = vmatprep.subr.mxu0 0.0
    %1406 = vmatpush1.msra.mxu0 0.0
    %1407 = vmatprep.subr.mxu0 0.0
    %1408 = vmatpush1.msra.mxu0 0.0
    %1409 = vmatprep.subr.mxu0 0.0
    %1410 = vmatpush1.msra.mxu0 0.0
    %1411 = vmatprep.subr.mxu0 0.0
    %1412 = vmatpush1.msra.mxu0 0.0
    %1413 = vmatprep.subr.mxu0 0.0
    %1414 = vmatpush1.msra.mxu0 0.0
    %1415 = vmatprep.subr.mxu0 0.0
    %1416 = vmatpush1.msra.mxu0 0.0
    %1417 = vmatprep.subr.mxu0 0.0
    %1418 = vmatpush1.msra.mxu0 0.0
    %1419 = vmatprep.subr.mxu0 0.0
    %1420 = vmatpush1.msra.mxu0 0.0
    %1421 = vmatprep.subr.mxu0 0.0
    %1422 = vmatpush1.msra.mxu0 0.0
    %1423 = vmatprep.subr.mxu0 0.0
    %1424 = vmatpush1.msra.mxu0 0.0
    %1425 = vmatprep.subr.mxu0 0.0
    %1426 = vmatpush1.msra.mxu0 0.0
    %1427 = vmatprep.subr.mxu0 0.0
    %1428 = vmatpush1.msra.mxu0 0.0
    %1429 = vmatprep.subr.mxu0 0.0
    %1430 = vmatpush1.msra.mxu0 0.0
    %1431 = vmatprep.mubr.f32.mxu0 0.0
    %1432 = vmatmul.mubr.f32.gmra.mrb[0].mxu0 %v1365
    %v1433 = vpop.f32.mrb[0].mxu0
    %v1434 = vadd.f32 %v1349, %v1433
    %v1435 = vpop.f32.mrb[0].mxu0
    %1436 = vdwg.mxu0
    %v1437 = vmax.f32 %v1434, 0.0
    %1438 = vst.msk [vmem:[#allocation2 + $0x6] sm:$0x3] %vm134, %v1437
    %v1439 = vld [vmem:[%s0 + $0x6] sm:$0x3]
    %s1440 = scalar_lea.vmem %s1, 624
    %v1441 = vld [vmem:[%s1440] sm:$0xff]
    %v1442 = vld [vmem:[%s1440 + $0x8] sm:$0xff]
    %v1443 = vld [vmem:[%s1440 + $0x10] sm:$0xff]
    %v1444 = vld [vmem:[%s1440 + $0x18] sm:$0xff]
    %v1445 = vld [vmem:[%s1440 + $0x20] sm:$0xff]
    %v1446 = vld [vmem:[%s1440 + $0x28] sm:$0xff]
    %v1447 = vld [vmem:[%s2] sm:$0x1]
    %v1449 = vlaneseq
    %v1450 = vshrl.u32 %v1449, 7
    %v1451 = vsub.s32 0, %v1450
    %v1452 = vrot.slane %v1447, %v1451
    %v1456 = vunpack.c.l.s4 1983009808
    %v1457 = vunpack.c.0.s8 %v1456
    %v1458 = vlaneseq
    %v1459 = vshrl.u32 %v1458, 7
    %v1460 = vsub.s32 %v1457, %v1459
    %v1461 = vrot.slane %v1439, %v1460
    %1462 = vrot.lane.b32.xlu0 %v1461, 112
    %v1463 = vpop.permute.xlu0 %1462
    %v1464 = vsel %vm59, %v1463, 0
    %1466 = vmatprep.subr.mxu0 0.0
    %1467 = vmatpush1.msra.mxu0 %v1441
    %1468 = vmatprep.subr.mxu0 0.0
    %1469 = vmatpush1.msra.mxu0 %v1442
    %1470 = vmatprep.subr.mxu0 0.0
    %1471 = vmatpush1.msra.mxu0 %v1443
    %1472 = vmatprep.subr.mxu0 0.0
    %1473 = vmatpush1.msra.mxu0 %v1444
    %1474 = vmatprep.subr.mxu0 0.0
    %1475 = vmatpush1.msra.mxu0 %v1445
    %1476 = vmatprep.subr.mxu0 0.0
    %1477 = vmatpush1.msra.mxu0 %v1446
    %1478 = vmatprep.subr.mxu0 0.0
    %1479 = vmatpush1.msra.mxu0 0.0
    %1480 = vmatprep.subr.mxu0 0.0
    %1481 = vmatpush1.msra.mxu0 0.0
    %1482 = vmatprep.subr.mxu0 0.0
    %1483 = vmatpush1.msra.mxu0 0.0
    %1484 = vmatprep.subr.mxu0 0.0
    %1485 = vmatpush1.msra.mxu0 0.0
    %1486 = vmatprep.subr.mxu0 0.0
    %1487 = vmatpush1.msra.mxu0 0.0
    %1488 = vmatprep.subr.mxu0 0.0
    %1489 = vmatpush1.msra.mxu0 0.0
    %1490 = vmatprep.subr.mxu0 0.0
    %1491 = vmatpush1.msra.mxu0 0.0
    %1492 = vmatprep.subr.mxu0 0.0
    %1493 = vmatpush1.msra.mxu0 0.0
    %1494 = vmatprep.subr.mxu0 0.0
    %1495 = vmatpush1.msra.mxu0 0.0
    %1496 = vmatprep.subr.mxu0 0.0
    %1497 = vmatpush1.msra.mxu0 0.0
    %1498 = vmatprep.subr.mxu0 0.0
    %1499 = vmatpush1.msra.mxu0 0.0
    %1500 = vmatprep.subr.mxu0 0.0
    %1501 = vmatpush1.msra.mxu0 0.0
    %1502 = vmatprep.subr.mxu0 0.0
    %1503 = vmatpush1.msra.mxu0 0.0
    %1504 = vmatprep.subr.mxu0 0.0
    %1505 = vmatpush1.msra.mxu0 0.0
    %1506 = vmatprep.subr.mxu0 0.0
    %1507 = vmatpush1.msra.mxu0 0.0
    %1508 = vmatprep.subr.mxu0 0.0
    %1509 = vmatpush1.msra.mxu0 0.0
    %1510 = vmatprep.subr.mxu0 0.0
    %1511 = vmatpush1.msra.mxu0 0.0
    %1512 = vmatprep.subr.mxu0 0.0
    %1513 = vmatpush1.msra.mxu0 0.0
    %1514 = vmatprep.subr.mxu0 0.0
    %1515 = vmatpush1.msra.mxu0 0.0
    %1516 = vmatprep.subr.mxu0 0.0
    %1517 = vmatpush1.msra.mxu0 0.0
    %1518 = vmatprep.subr.mxu0 0.0
    %1519 = vmatpush1.msra.mxu0 0.0
    %1520 = vmatprep.subr.mxu0 0.0
    %1521 = vmatpush1.msra.mxu0 0.0
    %1522 = vmatprep.subr.mxu0 0.0
    %1523 = vmatpush1.msra.mxu0 0.0
    %1524 = vmatprep.subr.mxu0 0.0
    %1525 = vmatpush1.msra.mxu0 0.0
    %1526 = vmatprep.subr.mxu0 0.0
    %1527 = vmatpush1.msra.mxu0 0.0
    %1528 = vmatprep.subr.mxu0 0.0
    %1529 = vmatpush1.msra.mxu0 0.0
    %1530 = vmatprep.mubr.f32.mxu0 0.0
    %1531 = vmatmul.mubr.f32.gmra.mrb[0].mxu0 %v1464
    %v1532 = vpop.f32.mrb[0].mxu0
    %v1533 = vadd.f32 %v1452, %v1532
    %v1534 = vpop.f32.mrb[0].mxu0
    %1535 = vdwg.mxu0
    %v1536 = vmax.f32 %v1533, 0.0
    %v1539 = vunpack.c.l.s4 1983009808
    %v1540 = vunpack.c.0.s8 %v1539
    %v1541 = vlaneseq
    %v1542 = vshrl.u32 %v1541, 7
    %v1543 = vsub.s32 %v1540, %v1542
    %v1544 = vrot.slane %v1536, %v1543
    %1545 = vrot.lane.b32.xlu0 %v1544, 32
    %v1546 = vpop.permute.xlu0 %1545
    %1548 = vst.msk [vmem:[#allocation2 + $0x6] sm:$0x3] %vm245, %v1546
    %v1549 = vld [vmem:[%s0 + $0x6] sm:$0x3]
    %s1550 = scalar_lea.vmem %s1, 672
    %v1551 = vld [vmem:[%s1550] sm:$0xff]
    %v1552 = vld [vmem:[%s1550 + $0x8] sm:$0xff]
    %v1553 = vld [vmem:[%s1550 + $0x10] sm:$0xff]
    %v1554 = vld [vmem:[%s1550 + $0x18] sm:$0xff]
    %v1555 = vld [vmem:[%s1550 + $0x20] sm:$0xff]
    %v1556 = vld [vmem:[%s1550 + $0x28] sm:$0xff]
    %v1557 = vld [vmem:[%s2] sm:$0x1]
    %v1559 = vlaneseq
    %v1560 = vshrl.u32 %v1559, 7
    %v1561 = vsub.s32 0, %v1560
    %v1562 = vrot.slane %v1557, %v1561
    %v1566 = vunpack.c.l.s4 1983009808
    %v1567 = vunpack.c.0.s8 %v1566
    %v1568 = vlaneseq
    %v1569 = vshrl.u32 %v1568, 7
    %v1570 = vsub.s32 %v1567, %v1569
    %v1571 = vrot.slane %v1549, %v1570
    %1572 = vrot.lane.b32.xlu0 %v1571, 80
    %v1573 = vpop.permute.xlu0 %1572
    %v1574 = vsel %vm59, %v1573, 0
    %1576 = vmatprep.subr.mxu0 0.0
    %1577 = vmatpush1.msra.mxu0 %v1551
    %1578 = vmatprep.subr.mxu0 0.0
    %1579 = vmatpush1.msra.mxu0 %v1552
    %1580 = vmatprep.subr.mxu0 0.0
    %1581 = vmatpush1.msra.mxu0 %v1553
    %1582 = vmatprep.subr.mxu0 0.0
    %1583 = vmatpush1.msra.mxu0 %v1554
    %1584 = vmatprep.subr.mxu0 0.0
    %1585 = vmatpush1.msra.mxu0 %v1555
    %1586 = vmatprep.subr.mxu0 0.0
    %1587 = vmatpush1.msra.mxu0 %v1556
    %1588 = vmatprep.subr.mxu0 0.0
    %1589 = vmatpush1.msra.mxu0 0.0
    %1590 = vmatprep.subr.mxu0 0.0
    %1591 = vmatpush1.msra.mxu0 0.0
    %1592 = vmatprep.subr.mxu0 0.0
    %1593 = vmatpush1.msra.mxu0 0.0
    %1594 = vmatprep.subr.mxu0 0.0
    %1595 = vmatpush1.msra.mxu0 0.0
    %1596 = vmatprep.subr.mxu0 0.0
    %1597 = vmatpush1.msra.mxu0 0.0
    %1598 = vmatprep.subr.mxu0 0.0
    %1599 = vmatpush1.msra.mxu0 0.0
    %1600 = vmatprep.subr.mxu0 0.0
    %1601 = vmatpush1.msra.mxu0 0.0
    %1602 = vmatprep.subr.mxu0 0.0
    %1603 = vmatpush1.msra.mxu0 0.0
    %1604 = vmatprep.subr.mxu0 0.0
    %1605 = vmatpush1.msra.mxu0 0.0
    %1606 = vmatprep.subr.mxu0 0.0
    %1607 = vmatpush1.msra.mxu0 0.0
    %1608 = vmatprep.subr.mxu0 0.0
    %1609 = vmatpush1.msra.mxu0 0.0
    %1610 = vmatprep.subr.mxu0 0.0
    %1611 = vmatpush1.msra.mxu0 0.0
    %1612 = vmatprep.subr.mxu0 0.0
    %1613 = vmatpush1.msra.mxu0 0.0
    %1614 = vmatprep.subr.mxu0 0.0
    %1615 = vmatpush1.msra.mxu0 0.0
    %1616 = vmatprep.subr.mxu0 0.0
    %1617 = vmatpush1.msra.mxu0 0.0
    %1618 = vmatprep.subr.mxu0 0.0
    %1619 = vmatpush1.msra.mxu0 0.0
    %1620 = vmatprep.subr.mxu0 0.0
    %1621 = vmatpush1.msra.mxu0 0.0
    %1622 = vmatprep.subr.mxu0 0.0
    %1623 = vmatpush1.msra.mxu0 0.0
    %1624 = vmatprep.subr.mxu0 0.0
    %1625 = vmatpush1.msra.mxu0 0.0
    %1626 = vmatprep.subr.mxu0 0.0
    %1627 = vmatpush1.msra.mxu0 0.0
    %1628 = vmatprep.subr.mxu0 0.0
    %1629 = vmatpush1.msra.mxu0 0.0
    %1630 = vmatprep.subr.mxu0 0.0
    %1631 = vmatpush1.msra.mxu0 0.0
    %1632 = vmatprep.subr.mxu0 0.0
    %1633 = vmatpush1.msra.mxu0 0.0
    %1634 = vmatprep.subr.mxu0 0.0
    %1635 = vmatpush1.msra.mxu0 0.0
    %1636 = vmatprep.subr.mxu0 0.0
    %1637 = vmatpush1.msra.mxu0 0.0
    %1638 = vmatprep.subr.mxu0 0.0
    %1639 = vmatpush1.msra.mxu0 0.0
    %1640 = vmatprep.mubr.f32.mxu0 0.0
    %1641 = vmatmul.mubr.f32.gmra.mrb[0].mxu0 %v1574
    %v1642 = vpop.f32.mrb[0].mxu0
    %v1643 = vadd.f32 %v1562, %v1642
    %v1644 = vpop.f32.mrb[0].mxu0
    %1645 = vdwg.mxu0
    %v1646 = vmax.f32 %v1643, 0.0
    %v1649 = vunpack.c.l.s4 1983009808
    %v1650 = vunpack.c.0.s8 %v1649
    %v1651 = vlaneseq
    %v1652 = vshrl.u32 %v1651, 7
    %v1653 = vsub.s32 %v1650, %v1652
    %v1654 = vrot.slane %v1646, %v1653
    %1655 = vrot.lane.b32.xlu0 %v1654, 64
    %v1656 = vpop.permute.xlu0 %1655
    %1658 = vst.msk [vmem:[#allocation2 + $0x6] sm:$0x3] %vm356, %v1656
    %v1659 = vld [vmem:[%s0 + $0x6] sm:$0x3]
    %s1660 = scalar_lea.vmem %s1, 720
    %v1661 = vld [vmem:[%s1660] sm:$0xff]
    %v1662 = vld [vmem:[%s1660 + $0x8] sm:$0xff]
    %v1663 = vld [vmem:[%s1660 + $0x10] sm:$0xff]
    %v1664 = vld [vmem:[%s1660 + $0x18] sm:$0xff]
    %v1665 = vld [vmem:[%s1660 + $0x20] sm:$0xff]
    %v1666 = vld [vmem:[%s1660 + $0x28] sm:$0xff]
    %v1667 = vld [vmem:[%s2] sm:$0x1]
    %v1669 = vlaneseq
    %v1670 = vshrl.u32 %v1669, 7
    %v1671 = vsub.s32 0, %v1670
    %v1672 = vrot.slane %v1667, %v1671
    %v1676 = vunpack.c.l.s4 1983009808
    %v1677 = vunpack.c.0.s8 %v1676
    %v1678 = vlaneseq
    %v1679 = vshrl.u32 %v1678, 7
    %v1680 = vsub.s32 %v1677, %v1679
    %v1681 = vrot.slane %v1659, %v1680
    %1682 = vrot.lane.b32.xlu0 %v1681, 48
    %v1683 = vpop.permute.xlu0 %1682
    %v1684 = vsel %vm59, %v1683, 0
    %1686 = vmatprep.subr.mxu0 0.0
    %1687 = vmatpush1.msra.mxu0 %v1661
    %1688 = vmatprep.subr.mxu0 0.0
    %1689 = vmatpush1.msra.mxu0 %v1662
    %1690 = vmatprep.subr.mxu0 0.0
    %1691 = vmatpush1.msra.mxu0 %v1663
    %1692 = vmatprep.subr.mxu0 0.0
    %1693 = vmatpush1.msra.mxu0 %v1664
    %1694 = vmatprep.subr.mxu0 0.0
    %1695 = vmatpush1.msra.mxu0 %v1665
    %1696 = vmatprep.subr.mxu0 0.0
    %1697 = vmatpush1.msra.mxu0 %v1666
    %1698 = vmatprep.subr.mxu0 0.0
    %1699 = vmatpush1.msra.mxu0 0.0
    %1700 = vmatprep.subr.mxu0 0.0
    %1701 = vmatpush1.msra.mxu0 0.0
    %1702 = vmatprep.subr.mxu0 0.0
    %1703 = vmatpush1.msra.mxu0 0.0
    %1704 = vmatprep.subr.mxu0 0.0
    %1705 = vmatpush1.msra.mxu0 0.0
    %1706 = vmatprep.subr.mxu0 0.0
    %1707 = vmatpush1.msra.mxu0 0.0
    %1708 = vmatprep.subr.mxu0 0.0
    %1709 = vmatpush1.msra.mxu0 0.0
    %1710 = vmatprep.subr.mxu0 0.0
    %1711 = vmatpush1.msra.mxu0 0.0
    %1712 = vmatprep.subr.mxu0 0.0
    %1713 = vmatpush1.msra.mxu0 0.0
    %1714 = vmatprep.subr.mxu0 0.0
    %1715 = vmatpush1.msra.mxu0 0.0
    %1716 = vmatprep.subr.mxu0 0.0
    %1717 = vmatpush1.msra.mxu0 0.0
    %1718 = vmatprep.subr.mxu0 0.0
    %1719 = vmatpush1.msra.mxu0 0.0
    %1720 = vmatprep.subr.mxu0 0.0
    %1721 = vmatpush1.msra.mxu0 0.0
    %1722 = vmatprep.subr.mxu0 0.0
    %1723 = vmatpush1.msra.mxu0 0.0
    %1724 = vmatprep.subr.mxu0 0.0
    %1725 = vmatpush1.msra.mxu0 0.0
    %1726 = vmatprep.subr.mxu0 0.0
    %1727 = vmatpush1.msra.mxu0 0.0
    %1728 = vmatprep.subr.mxu0 0.0
    %1729 = vmatpush1.msra.mxu0 0.0
    %1730 = vmatprep.subr.mxu0 0.0
    %1731 = vmatpush1.msra.mxu0 0.0
    %1732 = vmatprep.subr.mxu0 0.0
    %1733 = vmatpush1.msra.mxu0 0.0
    %1734 = vmatprep.subr.mxu0 0.0
    %1735 = vmatpush1.msra.mxu0 0.0
    %1736 = vmatprep.subr.mxu0 0.0
    %1737 = vmatpush1.msra.mxu0 0.0
    %1738 = vmatprep.subr.mxu0 0.0
    %1739 = vmatpush1.msra.mxu0 0.0
    %1740 = vmatprep.subr.mxu0 0.0
    %1741 = vmatpush1.msra.mxu0 0.0
    %1742 = vmatprep.subr.mxu0 0.0
    %1743 = vmatpush1.msra.mxu0 0.0
    %1744 = vmatprep.subr.mxu0 0.0
    %1745 = vmatpush1.msra.mxu0 0.0
    %1746 = vmatprep.subr.mxu0 0.0
    %1747 = vmatpush1.msra.mxu0 0.0
    %1748 = vmatprep.subr.mxu0 0.0
    %1749 = vmatpush1.msra.mxu0 0.0
    %1750 = vmatprep.mubr.f32.mxu0 0.0
    %1751 = vmatmul.mubr.f32.gmra.mrb[0].mxu0 %v1684
    %v1752 = vpop.f32.mrb[0].mxu0
    %v1753 = vadd.f32 %v1672, %v1752
    %v1754 = vpop.f32.mrb[0].mxu0
    %1755 = vdwg.mxu0
    %v1756 = vmax.f32 %v1753, 0.0
    %v1759 = vunpack.c.l.s4 1983009808
    %v1760 = vunpack.c.0.s8 %v1759
    %v1761 = vlaneseq
    %v1762 = vshrl.u32 %v1761, 7
    %v1763 = vsub.s32 %v1760, %v1762
    %v1764 = vrot.slane %v1756, %v1763
    %1765 = vrot.lane.b32.xlu0 %v1764, 96
    %v1766 = vpop.permute.xlu0 %1765
    %1768 = vst.msk [vmem:[#allocation2 + $0x6] sm:$0x3] %vm467, %v1766
    %v1769 = vld [vmem:[#allocation2] sm:$0xff]
    %v1770 = vld [vmem:[%s3] sm:$0xff]
    %v1771 = vld [vmem:[%s3 + $0x8] sm:$0xff]
    %v1772 = vld [vmem:[%s3 + $0x10] sm:$0xff]
    %v1773 = vld [vmem:[%s3 + $0x18] sm:$0xff]
    %v1774 = vld [vmem:[%s3 + $0x20] sm:$0xff]
    %v1775 = vld [vmem:[%s3 + $0x28] sm:$0xff]
    %v1776 = vld [vmem:[%s3 + $0x30] sm:$0xff]
    %v1777 = vld [vmem:[%s3 + $0x38] sm:$0xff]
    %v1778 = vld [vmem:[%s3 + $0x40] sm:$0xff]
    %v1779 = vld [vmem:[%s3 + $0x48] sm:$0xff]
    %v1780 = vld [vmem:[%s3 + $0x50] sm:$0xff]
    %v1781 = vld [vmem:[%s3 + $0x58] sm:$0xff]
    %v1782 = vld [vmem:[%s3 + $0x60] sm:$0xff]
    %v1783 = vld [vmem:[%s3 + $0x68] sm:$0xff]
    %v1784 = vld [vmem:[%s3 + $0x70] sm:$0xff]
    %v1785 = vld [vmem:[%s3 + $0x78] sm:$0xff]
    %v1786 = vld [vmem:[%s3 + $0x80] sm:$0xff]
    %v1787 = vld [vmem:[%s3 + $0x88] sm:$0xff]
    %v1788 = vld [vmem:[%s3 + $0x90] sm:$0xff]
    %v1789 = vld [vmem:[%s3 + $0x98] sm:$0xff]
    %v1790 = vld [vmem:[%s3 + $0xa0] sm:$0xff]
    %v1791 = vld [vmem:[%s3 + $0xa8] sm:$0xff]
    %v1792 = vld [vmem:[%s3 + $0xb0] sm:$0xff]
    %v1793 = vld [vmem:[%s3 + $0xb8] sm:$0xff]
    %v1794 = vld [vmem:[%s3 + $0xc0] sm:$0xff]
    %v1795 = vld [vmem:[%s3 + $0xc8] sm:$0xff]
    %v1796 = vld [vmem:[%s3 + $0xd0] sm:$0xff]
    %v1797 = vld [vmem:[%s3 + $0xd8] sm:$0xff]
    %v1798 = vld [vmem:[%s3 + $0xe0] sm:$0xff]
    %v1799 = vld [vmem:[%s3 + $0xe8] sm:$0xff]
    %v1800 = vld [vmem:[%s3 + $0xf0] sm:$0xff]
    %v1801 = vld [vmem:[%s3 + $0xf8] sm:$0xff]
    %v1802 = vld [vmem:[%s3 + $0x100] sm:$0xff]
    %v1803 = vld [vmem:[%s3 + $0x108] sm:$0xff]
    %v1804 = vld [vmem:[%s3 + $0x110] sm:$0xff]
    %v1805 = vld [vmem:[%s3 + $0x118] sm:$0xff]
    %v1806 = vld [vmem:[%s3 + $0x120] sm:$0xff]
    %v1807 = vld [vmem:[%s3 + $0x128] sm:$0xff]
    %v1808 = vld [vmem:[%s3 + $0x130] sm:$0xff]
    %v1809 = vld [vmem:[%s3 + $0x138] sm:$0xff]
    %v1810 = vld [vmem:[%s3 + $0x140] sm:$0xff]
    %v1811 = vld [vmem:[%s3 + $0x148] sm:$0xff]
    %v1812 = vld [vmem:[%s3 + $0x150] sm:$0xff]
    %v1813 = vld [vmem:[%s3 + $0x158] sm:$0xff]
    %v1814 = vld [vmem:[%s3 + $0x160] sm:$0xff]
    %v1815 = vld [vmem:[%s3 + $0x168] sm:$0xff]
    %v1816 = vld [vmem:[%s3 + $0x170] sm:$0xff]
    %v1817 = vld [vmem:[%s3 + $0x178] sm:$0xff]
    %v1818 = vld [vmem:[%s3 + $0x180] sm:$0xff]
    %v1819 = vld [vmem:[%s3 + $0x188] sm:$0xff]
    %v1820 = vld [vmem:[%s3 + $0x190] sm:$0xff]
    %v1821 = vld [vmem:[%s3 + $0x198] sm:$0xff]
    %v1822 = vld [vmem:[%s3 + $0x1a0] sm:$0xff]
    %v1823 = vld [vmem:[%s3 + $0x1a8] sm:$0xff]
    %v1824 = vld [vmem:[%s3 + $0x1b0] sm:$0xff]
    %v1825 = vld [vmem:[%s3 + $0x1b8] sm:$0xff]
    %v1826 = vld [vmem:[%s3 + $0x1c0] sm:$0xff]
    %v1827 = vld [vmem:[%s3 + $0x1c8] sm:$0xff]
    %v1828 = vld [vmem:[%s3 + $0x1d0] sm:$0xff]
    %v1829 = vld [vmem:[%s3 + $0x1d8] sm:$0xff]
    %v1830 = vld [vmem:[%s3 + $0x1e0] sm:$0xff]
    %v1831 = vld [vmem:[%s3 + $0x1e8] sm:$0xff]
    %v1832 = vld [vmem:[%s3 + $0x1f0] sm:$0xff]
    %v1833 = vld [vmem:[%s3 + $0x1f8] sm:$0xff]
    %v1834 = vld [vmem:[%s4] sm:$0x1]
    %v1836 = vlaneseq
    %v1837 = vshrl.u32 %v1836, 7
    %v1838 = vsub.s32 0, %v1837
    %v1839 = vrot.slane %v1834, %v1838
    %v1842 = vcombine.high %v1769, %v1769
    %v1844 = vunpack.c.l.s4 1983009808
    %v1845 = vunpack.c.0.s8 %v1844
    %v1846 = vlaneseq
    %v1847 = vshrl.u32 %v1846, 7
    %v1848 = vsub.s32 %v1845, %v1847
    %v1849 = vrot.slane %v1769, %v1848
    %v1851 = vunpack.c.l.s4 1983009808
    %v1852 = vunpack.c.0.s8 %v1851
    %v1853 = vlaneseq
    %v1854 = vshrl.u32 %v1853, 7
    %v1855 = vsub.s32 %v1852, %v1854
    %v1856 = vrot.slane %v1842, %v1855
    %v1857 = vcombine.high %v1849, %v1849
    %v1858 = vcombine.high %v1856, %v1856
    %1863 = vmatprep.subr.mxu0 0.0
    %1864 = vmatpush1.msra.mxu0 %v1770
    %1865 = vmatprep.subr.mxu0 0.0
    %1866 = vmatpush1.msra.mxu0 %v1771
    %1867 = vmatprep.subr.mxu0 0.0
    %1868 = vmatpush1.msra.mxu0 %v1772
    %1869 = vmatprep.subr.mxu0 0.0
    %1870 = vmatpush1.msra.mxu0 %v1773
    %1871 = vmatprep.subr.mxu0 0.0
    %1872 = vmatpush1.msra.mxu0 %v1774
    %1873 = vmatprep.subr.mxu0 0.0
    %1874 = vmatpush1.msra.mxu0 %v1775
    %1875 = vmatprep.subr.mxu0 0.0
    %1876 = vmatpush1.msra.mxu0 %v1776
    %1877 = vmatprep.subr.mxu0 0.0
    %1878 = vmatpush1.msra.mxu0 %v1777
    %1879 = vmatprep.subr.mxu0 0.0
    %1880 = vmatpush1.msra.mxu0 %v1778
    %1881 = vmatprep.subr.mxu0 0.0
    %1882 = vmatpush1.msra.mxu0 %v1779
    %1883 = vmatprep.subr.mxu0 0.0
    %1884 = vmatpush1.msra.mxu0 %v1780
    %1885 = vmatprep.subr.mxu0 0.0
    %1886 = vmatpush1.msra.mxu0 %v1781
    %1887 = vmatprep.subr.mxu0 0.0
    %1888 = vmatpush1.msra.mxu0 %v1782
    %1889 = vmatprep.subr.mxu0 0.0
    %1890 = vmatpush1.msra.mxu0 %v1783
    %1891 = vmatprep.subr.mxu0 0.0
    %1892 = vmatpush1.msra.mxu0 %v1784
    %1893 = vmatprep.subr.mxu0 0.0
    %1894 = vmatpush1.msra.mxu0 %v1785
    %1895 = vmatprep.subr.mxu0 0.0
    %1896 = vmatpush1.msra.mxu0 %v1786
    %1897 = vmatprep.subr.mxu0 0.0
    %1898 = vmatpush1.msra.mxu0 %v1787
    %1899 = vmatprep.subr.mxu0 0.0
    %1900 = vmatpush1.msra.mxu0 %v1788
    %1901 = vmatprep.subr.mxu0 0.0
    %1902 = vmatpush1.msra.mxu0 %v1789
    %1903 = vmatprep.subr.mxu0 0.0
    %1904 = vmatpush1.msra.mxu0 %v1790
    %1905 = vmatprep.subr.mxu0 0.0
    %1906 = vmatpush1.msra.mxu0 %v1791
    %1907 = vmatprep.subr.mxu0 0.0
    %1908 = vmatpush1.msra.mxu0 %v1792
    %1909 = vmatprep.subr.mxu0 0.0
    %1910 = vmatpush1.msra.mxu0 %v1793
    %1911 = vmatprep.subr.mxu0 0.0
    %1912 = vmatpush1.msra.mxu0 %v1794
    %1913 = vmatprep.subr.mxu0 0.0
    %1914 = vmatpush1.msra.mxu0 %v1795
    %1915 = vmatprep.subr.mxu0 0.0
    %1916 = vmatpush1.msra.mxu0 %v1796
    %1917 = vmatprep.subr.mxu0 0.0
    %1918 = vmatpush1.msra.mxu0 %v1797
    %1919 = vmatprep.subr.mxu0 0.0
    %1920 = vmatpush1.msra.mxu0 %v1798
    %1921 = vmatprep.subr.mxu0 0.0
    %1922 = vmatpush1.msra.mxu0 %v1799
    %1923 = vmatprep.subr.mxu0 0.0
    %1924 = vmatpush1.msra.mxu0 %v1800
    %1925 = vmatprep.subr.mxu0 0.0
    %1926 = vmatpush1.msra.mxu0 %v1801
    %1927 = vmatprep.mubr.f32.mxu0 %v1857
    %1928 = vmatmul.mubr.f32.gmra.mrb[0].mxu0 %v1849
    %v1929 = vpop.f32.mrb[0].mxu0
    %v1930 = vadd.f32 %v1839, %v1929
    %v1931 = vpop.f32.mrb[0].mxu0
    %1932 = vdwg.mxu0
    %1933 = vmatprep.subr.mxu0 0.0
    %1934 = vmatpush1.msra.mxu0 %v1802
    %1935 = vmatprep.subr.mxu0 0.0
    %1936 = vmatpush1.msra.mxu0 %v1803
    %1937 = vmatprep.subr.mxu0 0.0
    %1938 = vmatpush1.msra.mxu0 %v1804
    %1939 = vmatprep.subr.mxu0 0.0
    %1940 = vmatpush1.msra.mxu0 %v1805
    %1941 = vmatprep.subr.mxu0 0.0
    %1942 = vmatpush1.msra.mxu0 %v1806
    %1943 = vmatprep.subr.mxu0 0.0
    %1944 = vmatpush1.msra.mxu0 %v1807
    %1945 = vmatprep.subr.mxu0 0.0
    %1946 = vmatpush1.msra.mxu0 %v1808
    %1947 = vmatprep.subr.mxu0 0.0
    %1948 = vmatpush1.msra.mxu0 %v1809
    %1949 = vmatprep.subr.mxu0 0.0
    %1950 = vmatpush1.msra.mxu0 %v1810
    %1951 = vmatprep.subr.mxu0 0.0
    %1952 = vmatpush1.msra.mxu0 %v1811
    %1953 = vmatprep.subr.mxu0 0.0
    %1954 = vmatpush1.msra.mxu0 %v1812
    %1955 = vmatprep.subr.mxu0 0.0
    %1956 = vmatpush1.msra.mxu0 %v1813
    %1957 = vmatprep.subr.mxu0 0.0
    %1958 = vmatpush1.msra.mxu0 %v1814
    %1959 = vmatprep.subr.mxu0 0.0
    %1960 = vmatpush1.msra.mxu0 %v1815
    %1961 = vmatprep.subr.mxu0 0.0
    %1962 = vmatpush1.msra.mxu0 %v1816
    %1963 = vmatprep.subr.mxu0 0.0
    %1964 = vmatpush1.msra.mxu0 %v1817
    %1965 = vmatprep.subr.mxu0 0.0
    %1966 = vmatpush1.msra.mxu0 %v1818
    %1967 = vmatprep.subr.mxu0 0.0
    %1968 = vmatpush1.msra.mxu0 %v1819
    %1969 = vmatprep.subr.mxu0 0.0
    %1970 = vmatpush1.msra.mxu0 %v1820
    %1971 = vmatprep.subr.mxu0 0.0
    %1972 = vmatpush1.msra.mxu0 %v1821
    %1973 = vmatprep.subr.mxu0 0.0
    %1974 = vmatpush1.msra.mxu0 %v1822
    %1975 = vmatprep.subr.mxu0 0.0
    %1976 = vmatpush1.msra.mxu0 %v1823
    %1977 = vmatprep.subr.mxu0 0.0
    %1978 = vmatpush1.msra.mxu0 %v1824
    %1979 = vmatprep.subr.mxu0 0.0
    %1980 = vmatpush1.msra.mxu0 %v1825
    %1981 = vmatprep.subr.mxu0 0.0
    %1982 = vmatpush1.msra.mxu0 %v1826
    %1983 = vmatprep.subr.mxu0 0.0
    %1984 = vmatpush1.msra.mxu0 %v1827
    %1985 = vmatprep.subr.mxu0 0.0
    %1986 = vmatpush1.msra.mxu0 %v1828
    %1987 = vmatprep.subr.mxu0 0.0
    %1988 = vmatpush1.msra.mxu0 %v1829
    %1989 = vmatprep.subr.mxu0 0.0
    %1990 = vmatpush1.msra.mxu0 %v1830
    %1991 = vmatprep.subr.mxu0 0.0
    %1992 = vmatpush1.msra.mxu0 %v1831
    %1993 = vmatprep.subr.mxu0 0.0
    %1994 = vmatpush1.msra.mxu0 %v1832
    %1995 = vmatprep.subr.mxu0 0.0
    %1996 = vmatpush1.msra.mxu0 %v1833
    %1997 = vmatprep.mubr.f32.mxu0 %v1858
    %1998 = vmatmul.mubr.f32.gmra.mrb[0].mxu0 %v1856
    %v1999 = vpop.f32.mrb[0].mxu0
    %v2000 = vadd.f32 %v1930, %v1999
    %v2001 = vpop.f32.mrb[0].mxu0
    %2002 = vdwg.mxu0
    %v2003 = vmax.f32 %v2000, 0.0
    %v2004 = vld [vmem:[%s5] sm:$0xff]
    %v2005 = vld [vmem:[%s5 + $0x8] sm:$0xff]
    %v2006 = vld [vmem:[%s5 + $0x10] sm:$0xff]
    %v2007 = vld [vmem:[%s5 + $0x18] sm:$0xff]
    %v2008 = vld [vmem:[%s5 + $0x20] sm:$0xff]
    %v2009 = vld [vmem:[%s5 + $0x28] sm:$0xff]
    %v2010 = vld [vmem:[%s5 + $0x30] sm:$0xff]
    %v2011 = vld [vmem:[%s5 + $0x38] sm:$0xff]
    %v2012 = vld [vmem:[%s5 + $0x40] sm:$0xff]
    %v2013 = vld [vmem:[%s5 + $0x48] sm:$0xff]
    %v2014 = vld [vmem:[%s5 + $0x50] sm:$0xff]
    %v2015 = vld [vmem:[%s5 + $0x58] sm:$0xff]
    %v2016 = vld [vmem:[%s5 + $0x60] sm:$0xff]
    %v2017 = vld [vmem:[%s5 + $0x68] sm:$0xff]
    %v2018 = vld [vmem:[%s5 + $0x70] sm:$0xff]
    %v2019 = vld [vmem:[%s5 + $0x78] sm:$0xff]
    %v2020 = vld [vmem:[%s6] sm:$0x1]
    %v2022 = vlaneseq
    %v2023 = vshrl.u32 %v2022, 7
    %v2024 = vsub.s32 0, %v2023
    %v2025 = vrot.slane %v2020, %v2024
    %2027 = vmatprep.subr.mxu0 0.0
    %2028 = vmatpush1.msra.mxu0 %v2004
    %2029 = vmatprep.subr.mxu0 0.0
    %2030 = vmatpush1.msra.mxu0 %v2005
    %2031 = vmatprep.subr.mxu0 0.0
    %2032 = vmatpush1.msra.mxu0 %v2006
    %2033 = vmatprep.subr.mxu0 0.0
    %2034 = vmatpush1.msra.mxu0 %v2007
    %2035 = vmatprep.subr.mxu0 0.0
    %2036 = vmatpush1.msra.mxu0 %v2008
    %2037 = vmatprep.subr.mxu0 0.0
    %2038 = vmatpush1.msra.mxu0 %v2009
    %2039 = vmatprep.subr.mxu0 0.0
    %2040 = vmatpush1.msra.mxu0 %v2010
    %2041 = vmatprep.subr.mxu0 0.0
    %2042 = vmatpush1.msra.mxu0 %v2011
    %2043 = vmatprep.subr.mxu0 0.0
    %2044 = vmatpush1.msra.mxu0 %v2012
    %2045 = vmatprep.subr.mxu0 0.0
    %2046 = vmatpush1.msra.mxu0 %v2013
    %2047 = vmatprep.subr.mxu0 0.0
    %2048 = vmatpush1.msra.mxu0 %v2014
    %2049 = vmatprep.subr.mxu0 0.0
    %2050 = vmatpush1.msra.mxu0 %v2015
    %2051 = vmatprep.subr.mxu0 0.0
    %2052 = vmatpush1.msra.mxu0 %v2016
    %2053 = vmatprep.subr.mxu0 0.0
    %2054 = vmatpush1.msra.mxu0 %v2017
    %2055 = vmatprep.subr.mxu0 0.0
    %2056 = vmatpush1.msra.mxu0 %v2018
    %2057 = vmatprep.subr.mxu0 0.0
    %2058 = vmatpush1.msra.mxu0 %v2019
    %2059 = vmatprep.subr.mxu0 0.0
    %2060 = vmatpush1.msra.mxu0 0.0
    %2061 = vmatprep.subr.mxu0 0.0
    %2062 = vmatpush1.msra.mxu0 0.0
    %2063 = vmatprep.subr.mxu0 0.0
    %2064 = vmatpush1.msra.mxu0 0.0
    %2065 = vmatprep.subr.mxu0 0.0
    %2066 = vmatpush1.msra.mxu0 0.0
    %2067 = vmatprep.subr.mxu0 0.0
    %2068 = vmatpush1.msra.mxu0 0.0
    %2069 = vmatprep.subr.mxu0 0.0
    %2070 = vmatpush1.msra.mxu0 0.0
    %2071 = vmatprep.subr.mxu0 0.0
    %2072 = vmatpush1.msra.mxu0 0.0
    %2073 = vmatprep.subr.mxu0 0.0
    %2074 = vmatpush1.msra.mxu0 0.0
    %2075 = vmatprep.subr.mxu0 0.0
    %2076 = vmatpush1.msra.mxu0 0.0
    %2077 = vmatprep.subr.mxu0 0.0
    %2078 = vmatpush1.msra.mxu0 0.0
    %2079 = vmatprep.subr.mxu0 0.0
    %2080 = vmatpush1.msra.mxu0 0.0
    %2081 = vmatprep.subr.mxu0 0.0
    %2082 = vmatpush1.msra.mxu0 0.0
    %2083 = vmatprep.subr.mxu0 0.0
    %2084 = vmatpush1.msra.mxu0 0.0
    %2085 = vmatprep.subr.mxu0 0.0
    %2086 = vmatpush1.msra.mxu0 0.0
    %2087 = vmatprep.subr.mxu0 0.0
    %2088 = vmatpush1.msra.mxu0 0.0
    %2089 = vmatprep.subr.mxu0 0.0
    %2090 = vmatpush1.msra.mxu0 0.0
    %2091 = vmatprep.mubr.f32.mxu0 0.0
    %2092 = vmatmul.mubr.f32.gmra.mrb[0].mxu0 %v2003
    %v2093 = vpop.f32.mrb[0].mxu0
    %v2094 = vadd.f32 %v2025, %v2093
    %v2095 = vpop.f32.mrb[0].mxu0
    %2096 = vdwg.mxu0
    %v2097 = vmax.f32 %v2094, 0.0
    %v2098 = vld [vmem:[%s7] sm:$0xff]
    %v2099 = vld [vmem:[%s7 + $0x8] sm:$0xff]
    %v2100 = vld [vmem:[%s7 + $0x10] sm:$0xff]
    %v2101 = vld [vmem:[%s7 + $0x18] sm:$0xff]
    %v2102 = vld [vmem:[%s8] sm:$0x1]
    %v2104 = vlaneseq
    %v2105 = vshrl.u32 %v2104, 7
    %v2106 = vsub.s32 0, %v2105
    %v2107 = vrot.slane %v2102, %v2106
    %vm2109 = vcmask 261120
    %v2111 = vsel %vm2109, %v2097, 0
    %2113 = vmatprep.subr.mxu0 0.0
    %2114 = vmatpush1.msra.mxu0 %v2098
    %2115 = vmatprep.subr.mxu0 0.0
    %2116 = vmatpush1.msra.mxu0 %v2099
    %2117 = vmatprep.subr.mxu0 0.0
    %2118 = vmatpush1.msra.mxu0 %v2100
    %2119 = vmatprep.subr.mxu0 0.0
    %2120 = vmatpush1.msra.mxu0 %v2101
    %2121 = vmatprep.subr.mxu0 0.0
    %2122 = vmatpush1.msra.mxu0 0.0
    %2123 = vmatprep.subr.mxu0 0.0
    %2124 = vmatpush1.msra.mxu0 0.0
    %2125 = vmatprep.subr.mxu0 0.0
    %2126 = vmatpush1.msra.mxu0 0.0
    %2127 = vmatprep.subr.mxu0 0.0
    %2128 = vmatpush1.msra.mxu0 0.0
    %2129 = vmatprep.subr.mxu0 0.0
    %2130 = vmatpush1.msra.mxu0 0.0
    %2131 = vmatprep.subr.mxu0 0.0
    %2132 = vmatpush1.msra.mxu0 0.0
    %2133 = vmatprep.subr.mxu0 0.0
    %2134 = vmatpush1.msra.mxu0 0.0
    %2135 = vmatprep.subr.mxu0 0.0
    %2136 = vmatpush1.msra.mxu0 0.0
    %2137 = vmatprep.subr.mxu0 0.0
    %2138 = vmatpush1.msra.mxu0 0.0
    %2139 = vmatprep.subr.mxu0 0.0
    %2140 = vmatpush1.msra.mxu0 0.0
    %2141 = vmatprep.subr.mxu0 0.0
    %2142 = vmatpush1.msra.mxu0 0.0
    %2143 = vmatprep.subr.mxu0 0.0
    %2144 = vmatpush1.msra.mxu0 0.0
    %2145 = vmatprep.subr.mxu0 0.0
    %2146 = vmatpush1.msra.mxu0 0.0
    %2147 = vmatprep.subr.mxu0 0.0
    %2148 = vmatpush1.msra.mxu0 0.0
    %2149 = vmatprep.subr.mxu0 0.0
    %2150 = vmatpush1.msra.mxu0 0.0
    %2151 = vmatprep.subr.mxu0 0.0
    %2152 = vmatpush1.msra.mxu0 0.0
    %2153 = vmatprep.subr.mxu0 0.0
    %2154 = vmatpush1.msra.mxu0 0.0
    %2155 = vmatprep.subr.mxu0 0.0
    %2156 = vmatpush1.msra.mxu0 0.0
    %2157 = vmatprep.subr.mxu0 0.0
    %2158 = vmatpush1.msra.mxu0 0.0
    %2159 = vmatprep.subr.mxu0 0.0
    %2160 = vmatpush1.msra.mxu0 0.0
    %2161 = vmatprep.subr.mxu0 0.0
    %2162 = vmatpush1.msra.mxu0 0.0
    %2163 = vmatprep.subr.mxu0 0.0
    %2164 = vmatpush1.msra.mxu0 0.0
    %2165 = vmatprep.subr.mxu0 0.0
    %2166 = vmatpush1.msra.mxu0 0.0
    %2167 = vmatprep.subr.mxu0 0.0
    %2168 = vmatpush1.msra.mxu0 0.0
    %2169 = vmatprep.subr.mxu0 0.0
    %2170 = vmatpush1.msra.mxu0 0.0
    %2171 = vmatprep.subr.mxu0 0.0
    %2172 = vmatpush1.msra.mxu0 0.0
    %2173 = vmatprep.subr.mxu0 0.0
    %2174 = vmatpush1.msra.mxu0 0.0
    %2175 = vmatprep.subr.mxu0 0.0
    %2176 = vmatpush1.msra.mxu0 0.0
    %2177 = vmatprep.mubr.f32.mxu0 0.0
    %2178 = vmatmul.mubr.f32.gmra.mrb[0].mxu0 %v2111
    %v2179 = vpop.f32.mrb[0].mxu0
    %v2180 = vadd.f32 %v2107, %v2179
    %v2181 = vpop.f32.mrb[0].mxu0
    %2182 = vdwg.mxu0
    %v2183 = vmax.f32 %v2180, 0.0
    %v2184 = vld [vmem:[%s9] sm:$0xff]
    %v2185 = vld [vmem:[%s10] sm:$0x1]
    %v2187 = vlaneseq
    %v2188 = vshrl.u32 %v2187, 7
    %v2189 = vsub.s32 0, %v2188
    %v2190 = vrot.slane %v2185, %v2189
    %vm2192 = vcmask 64512
    %v2194 = vsel %vm2192, %v2183, 0
    %2196 = vmatprep.subr.mxu0 0.0
    %2197 = vmatpush1.msra.mxu0 %v2184
    %2198 = vmatprep.subr.mxu0 0.0
    %2199 = vmatpush1.msra.mxu0 0.0
    %2200 = vmatprep.subr.mxu0 0.0
    %2201 = vmatpush1.msra.mxu0 0.0
    %2202 = vmatprep.subr.mxu0 0.0
    %2203 = vmatpush1.msra.mxu0 0.0
    %2204 = vmatprep.subr.mxu0 0.0
    %2205 = vmatpush1.msra.mxu0 0.0
    %2206 = vmatprep.subr.mxu0 0.0
    %2207 = vmatpush1.msra.mxu0 0.0
    %2208 = vmatprep.subr.mxu0 0.0
    %2209 = vmatpush1.msra.mxu0 0.0
    %2210 = vmatprep.subr.mxu0 0.0
    %2211 = vmatpush1.msra.mxu0 0.0
    %2212 = vmatprep.subr.mxu0 0.0
    %2213 = vmatpush1.msra.mxu0 0.0
    %2214 = vmatprep.subr.mxu0 0.0
    %2215 = vmatpush1.msra.mxu0 0.0
    %2216 = vmatprep.subr.mxu0 0.0
    %2217 = vmatpush1.msra.mxu0 0.0
    %2218 = vmatprep.subr.mxu0 0.0
    %2219 = vmatpush1.msra.mxu0 0.0
    %2220 = vmatprep.subr.mxu0 0.0
    %2221 = vmatpush1.msra.mxu0 0.0
    %2222 = vmatprep.subr.mxu0 0.0
    %2223 = vmatpush1.msra.mxu0 0.0
    %2224 = vmatprep.subr.mxu0 0.0
    %2225 = vmatpush1.msra.mxu0 0.0
    %2226 = vmatprep.subr.mxu0 0.0
    %2227 = vmatpush1.msra.mxu0 0.0
    %2228 = vmatprep.subr.mxu0 0.0
    %2229 = vmatpush1.msra.mxu0 0.0
    %2230 = vmatprep.subr.mxu0 0.0
    %2231 = vmatpush1.msra.mxu0 0.0
    %2232 = vmatprep.subr.mxu0 0.0
    %2233 = vmatpush1.msra.mxu0 0.0
    %2234 = vmatprep.subr.mxu0 0.0
    %2235 = vmatpush1.msra.mxu0 0.0
    %2236 = vmatprep.subr.mxu0 0.0
    %2237 = vmatpush1.msra.mxu0 0.0
    %2238 = vmatprep.subr.mxu0 0.0
    %2239 = vmatpush1.msra.mxu0 0.0
    %2240 = vmatprep.subr.mxu0 0.0
    %2241 = vmatpush1.msra.mxu0 0.0
    %2242 = vmatprep.subr.mxu0 0.0
    %2243 = vmatpush1.msra.mxu0 0.0
    %2244 = vmatprep.subr.mxu0 0.0
    %2245 = vmatpush1.msra.mxu0 0.0
    %2246 = vmatprep.subr.mxu0 0.0
    %2247 = vmatpush1.msra.mxu0 0.0
    %2248 = vmatprep.subr.mxu0 0.0
    %2249 = vmatpush1.msra.mxu0 0.0
    %2250 = vmatprep.subr.mxu0 0.0
    %2251 = vmatpush1.msra.mxu0 0.0
    %2252 = vmatprep.subr.mxu0 0.0
    %2253 = vmatpush1.msra.mxu0 0.0
    %2254 = vmatprep.subr.mxu0 0.0
    %2255 = vmatpush1.msra.mxu0 0.0
    %2256 = vmatprep.subr.mxu0 0.0
    %2257 = vmatpush1.msra.mxu0 0.0
    %2258 = vmatprep.subr.mxu0 0.0
    %2259 = vmatpush1.msra.mxu0 0.0
    %2260 = vmatprep.mubr.f32.mxu0 0.0
    %2261 = vmatmul.mubr.f32.gmra.mrb[0].mxu0 %v2194
    %v2262 = vpop.f32.mrb[0].mxu0
    %v2263 = vadd.f32 %v2190, %v2262
    %v2264 = vpop.f32.mrb[0].mxu0
    %2265 = vdwg.mxu0
    %v2266 = vmax.f32 %v2263, 0.0
    %v2267 = vld [vmem:[%s11] sm:$0xff]
    %v2268 = vld [vmem:[%s12] sm:$0x1]
    %v2270 = vlaneseq
    %v2271 = vshrl.u32 %v2270, 7
    %v2272 = vsub.s32 0, %v2271
    %v2273 = vrot.slane %v2268, %v2272
    %v2276 = vsel %vm2192, %v2266, 0
    %2278 = vmatprep.subr.mxu0 0.0
    %2279 = vmatpush1.msra.mxu0 %v2267
    %2280 = vmatprep.subr.mxu0 0.0
    %2281 = vmatpush1.msra.mxu0 0.0
    %2282 = vmatprep.subr.mxu0 0.0
    %2283 = vmatpush1.msra.mxu0 0.0
    %2284 = vmatprep.subr.mxu0 0.0
    %2285 = vmatpush1.msra.mxu0 0.0
    %2286 = vmatprep.subr.mxu0 0.0
    %2287 = vmatpush1.msra.mxu0 0.0
    %2288 = vmatprep.subr.mxu0 0.0
    %2289 = vmatpush1.msra.mxu0 0.0
    %2290 = vmatprep.subr.mxu0 0.0
    %2291 = vmatpush1.msra.mxu0 0.0
    %2292 = vmatprep.subr.mxu0 0.0
    %2293 = vmatpush1.msra.mxu0 0.0
    %2294 = vmatprep.subr.mxu0 0.0
    %2295 = vmatpush1.msra.mxu0 0.0
    %2296 = vmatprep.subr.mxu0 0.0
    %2297 = vmatpush1.msra.mxu0 0.0
    %2298 = vmatprep.subr.mxu0 0.0
    %2299 = vmatpush1.msra.mxu0 0.0
    %2300 = vmatprep.subr.mxu0 0.0
    %2301 = vmatpush1.msra.mxu0 0.0
    %2302 = vmatprep.subr.mxu0 0.0
    %2303 = vmatpush1.msra.mxu0 0.0
    %2304 = vmatprep.subr.mxu0 0.0
    %2305 = vmatpush1.msra.mxu0 0.0
    %2306 = vmatprep.subr.mxu0 0.0
    %2307 = vmatpush1.msra.mxu0 0.0
    %2308 = vmatprep.subr.mxu0 0.0
    %2309 = vmatpush1.msra.mxu0 0.0
    %2310 = vmatprep.subr.mxu0 0.0
    %2311 = vmatpush1.msra.mxu0 0.0
    %2312 = vmatprep.subr.mxu0 0.0
    %2313 = vmatpush1.msra.mxu0 0.0
    %2314 = vmatprep.subr.mxu0 0.0
    %2315 = vmatpush1.msra.mxu0 0.0
    %2316 = vmatprep.subr.mxu0 0.0
    %2317 = vmatpush1.msra.mxu0 0.0
    %2318 = vmatprep.subr.mxu0 0.0
    %2319 = vmatpush1.msra.mxu0 0.0
    %2320 = vmatprep.subr.mxu0 0.0
    %2321 = vmatpush1.msra.mxu0 0.0
    %2322 = vmatprep.subr.mxu0 0.0
    %2323 = vmatpush1.msra.mxu0 0.0
    %2324 = vmatprep.subr.mxu0 0.0
    %2325 = vmatpush1.msra.mxu0 0.0
    %2326 = vmatprep.subr.mxu0 0.0
    %2327 = vmatpush1.msra.mxu0 0.0
    %2328 = vmatprep.subr.mxu0 0.0
    %2329 = vmatpush1.msra.mxu0 0.0
    %2330 = vmatprep.subr.mxu0 0.0
    %2331 = vmatpush1.msra.mxu0 0.0
    %2332 = vmatprep.subr.mxu0 0.0
    %2333 = vmatpush1.msra.mxu0 0.0
    %2334 = vmatprep.subr.mxu0 0.0
    %2335 = vmatpush1.msra.mxu0 0.0
    %2336 = vmatprep.subr.mxu0 0.0
    %2337 = vmatpush1.msra.mxu0 0.0
    %2338 = vmatprep.subr.mxu0 0.0
    %2339 = vmatpush1.msra.mxu0 0.0
    %2340 = vmatprep.subr.mxu0 0.0
    %2341 = vmatpush1.msra.mxu0 0.0
    %2342 = vmatprep.mubr.f32.mxu0 0.0
    %2343 = vmatmul.mubr.f32.gmra.mrb[0].mxu0 %v2276
    %v2344 = vpop.f32.mrb[0].mxu0
    %v2345 = vadd.f32 %v2273, %v2344
    %v2346 = vpop.f32.mrb[0].mxu0
    %2347 = vdwg.mxu0
    %vm2348 = vcmask 9216
    %2349 = vst.msk [vmem:[#allocation3] sm:$0x3] %vm2348, %v2345
    // Predicated region
    $region54: #{taxinet32x16_forward.1} parent=1 // pred_check
      _
    $region55: #{taxinet32x16_forward.1} parent=1 // pred_check_branch
      %2351 = sbr.rel (0) target = $region57
    $region56: #{taxinet32x16_forward.1} parent=1 // pred_region
      %s2353 = ssub.s32 32, 32
      %2354 = vsyncadd [#allocation4], %s2353
      %s2356 = sshll.u32 [#allocation3], 4
      %s2357 = int_to_ptr.vmem [resolvable:$true] %s2356
      %2359 = dma.vmem_to_hbm [thread:$0]  %s2357, 32, %s13, [#allocation4]
    $region57: #{taxinet32x16_forward.1} parent=1 // pred_fallthru
      _
    // Predicated region
    $region58: #{taxinet32x16_forward.1} parent=1 // pred_check
      _
    $region59: #{taxinet32x16_forward.1} parent=1 // pred_check_branch
      %2361 = sbr.rel (0) target = $region61
    $region60: #{taxinet32x16_forward.1} parent=1 // pred_region
      %2362 = dma.done [#allocation4], 32
    $region61: #{taxinet32x16_forward.1} parent=1 // pred_fallthru
      _
    %2363 = vsyncpa [#allocation4], 1

</llo_original>
